<compile_context>
chip_gen: v5e
topology: v5e:2x2
jax: 0.10.0
libtpu: 0.0.40
codegen_flags: <defaults>
</compile_context>

<pallas_src>
import jax
import jax.numpy as jnp
from jax import lax
from jax.experimental import pallas as pl
from jax.experimental.pallas import tpu as pltpu


def _round_up(x: int, m: int) -> int:
    return (x + m - 1) // m * m


# --------------------------------------------------------------------------- kernels
def _critic_kernel_fused(s_ref, a_ref, w1_ref, b1_ref, w2_ref, b2_ref, w3_ref,
                         b3_ref, q_ref):
    """s:[blk,S] a:[blk,A] f32 | w1:[S+A,M] w2:[M,M] w3:[1,M] bf16 | b1/b2:[1,M] f32 |
    b3:[1] f32 (SMEM) | q:[1,blk] f32 (batch on the lane axis)."""
    # Layer 1: in-VMEM lane concat (S+A fits well inside one vreg width) + one matmul.
    x = jnp.concatenate([s_ref[...], a_ref[...]], axis=-1).astype(jnp.bfloat16)
    h1 = jnp.dot(x, w1_ref[...], preferred_element_type=jnp.float32) + b1_ref[...]
    h1 = jnp.maximum(h1, 0.0)                    # bias/ReLU in f32

    # Layer 2.
    h2 = jnp.dot(h1.astype(jnp.bfloat16), w2_ref[...],
                 preferred_element_type=jnp.float32) + b2_ref[...]
    h2 = jnp.maximum(h2, 0.0)

    # Layer 3 as w3_row @ h2^T (q.k^T pattern): Mosaic feeds the MXU a transposed RHS
    # directly (no full XLU vxpose of h2); (1, blk) result -> lane-dense output stores.
    q_row = lax.dot_general(w3_ref[...], h2.astype(jnp.bfloat16),
                            dimension_numbers=(((1,), (1,)), ((), ())),
                            preferred_element_type=jnp.float32)
    q_ref[...] = (q_row + b3_ref[0]).astype(q_ref.dtype)


def _critic_kernel_split(s_ref, a_ref, w1s_ref, w1a_ref, b1_ref, w2_ref, b2_ref,
                         w3_ref, b3_ref, q_ref):
    """Fallback layer-1: split-W1 (two small matmuls) instead of an in-kernel concat."""
    h1 = (jnp.dot(s_ref[...].astype(jnp.bfloat16), w1s_ref[...],
                  preferred_element_type=jnp.float32)
          + jnp.dot(a_ref[...].astype(jnp.bfloat16), w1a_ref[...],
                    preferred_element_type=jnp.float32)
          + b1_ref[...])
    h1 = jnp.maximum(h1, 0.0)
    h2 = jnp.dot(h1.astype(jnp.bfloat16), w2_ref[...],
                 preferred_element_type=jnp.float32) + b2_ref[...]
    h2 = jnp.maximum(h2, 0.0)
    q_row = lax.dot_general(w3_ref[...], h2.astype(jnp.bfloat16),
                            dimension_numbers=(((1,), (1,)), ((), ())),
                            preferred_element_type=jnp.float32)
    q_ref[...] = (q_row + b3_ref[0]).astype(q_ref.dtype)


# --------------------------------------------------------------------------- wrapper
def _choose_block(B, max_block, block_rows):
    if block_rows is not None:
        if block_rows >= B:
            return B
        assert block_rows % 128 == 0, "block_rows must be a multiple of 128 when it splits B"
        return block_rows
    if B <= 256:
        return B        # one block, no padding; splitting tiny batches only adds overhead
    assert max_block % 128 == 0, "max_block must be a multiple of 128"
    # >= 2 grid steps so dimension_semantics=("parallel",) can shard over v7x's 2 TCs;
    # big blocks amortize the ~0.35us/step overhead on v5e/v6e (single TC).
    return min(max_block, _round_up((B + 1) // 2, 128))


def _vmem_budget_bytes(blk, state_dim, action_dim, mid, single_buffer_weights):
    """Rough VMEM need from *lane-padded* tile sizes (narrow tiles pad to 128 lanes)."""
    def tile(rows, cols, itemsize, sub=8):
        return _round_up(rows, sub) * _round_up(cols, 128) * itemsize
    wbuf = 1 if single_buffer_weights else 2
    weights = wbuf * (tile(state_dim + action_dim, mid, 2, 16)   # bf16 tiles: 16 sublanes
                      + tile(mid, mid, 2, 16) + tile(1, mid, 2, 16)
                      + 2 * tile(1, mid, 4))
    io = 2 * (tile(blk, state_dim, 4) + tile(blk, action_dim, 4)) + 2 * tile(1, blk, 4)
    acts = 6 * tile(blk, mid, 4)          # x / h1 / h2 temporaries (f32 + bf16 copies)
    est = 2 * (weights + io + acts)       # headroom for compiler temporaries
    # clamp: >= known-good 32 MiB, <= 96 MiB (v5e/v6e have 128 MiB; on v7x (64 MiB
    # physical) shrink max_block instead of raising this further).
    return int(min(max(est, 32 * 1024 * 1024), 96 * 1024 * 1024))


def _forward_impl(s, a, params, *, blk, fuse_layer1, single_buffer_weights):
    w1, b1, w2, b2, w3, b3 = params
    B, state_dim = s.shape
    action_dim = a.shape[1]
    mid = w2.shape[0]
    grid = (pl.cdiv(B, blk),)             # ragged last block: Pallas clips the edge DMAs

    const = lambda i: (0, 0)              # same block every step -> stays VMEM-resident
    wkw = dict(pipeline_mode=pl.Buffered(1)) if single_buffer_weights else {}

    def wspec(shape):
        return pl.BlockSpec(shape, const, **wkw)

    def row_spec(cols):
        return pl.BlockSpec((blk, cols), lambda i: (i, 0))

    if fuse_layer1:
        kernel = _critic_kernel_fused
        w1_args, w1_specs = (w1,), [wspec(w1.shape)]
    else:
        kernel = _critic_kernel_split
        w1s, w1a = w1[:state_dim], w1[state_dim:]   # wrapper-level slice (tiny, bf16)
        w1_args, w1_specs = (w1s, w1a), [wspec(w1s.shape), wspec(w1a.shape)]

    out = pl.pallas_call(
        kernel,
        out_shape=jax.ShapeDtypeStruct((1, B), jnp.float32),
        grid_spec=pltpu.PrefetchScalarGridSpec(
            num_scalar_prefetch=0,
            grid=grid,
            in_specs=[row_spec(state_dim), row_spec(action_dim), *w1_specs,
                      wspec(b1.shape), wspec(w2.shape), wspec(b2.shape), wspec(w3.shape),
                      pl.BlockSpec(memory_space=pltpu.MemorySpace.SMEM)],  # b3 scalar
            out_specs=pl.BlockSpec((1, blk), lambda i: (0, i)),
        ),
        compiler_params=pltpu.CompilerParams(
            dimension_semantics=("parallel",),
            vmem_limit_bytes=_vmem_budget_bytes(blk, state_dim, action_dim, mid,
                                                single_buffer_weights),
        ),
    )(s, a, *w1_args, b1, w2, b2, w3, b3)

    return out.reshape(B, 1)              # (1, B) -> (B, 1): contiguous, metadata only


# Config cascade: (fuse_layer1, single_buffer_weights).  If the installed Pallas/Mosaic
# rejects the in-kernel lane concat or Buffered(1), fall back automatically (decision is
# cached so the fast path is re-used on subsequent calls).
_CONFIGS = ((True, True), (True, False), (False, True), (False, False))
_cfg_idx = 0


def critic_forward(s, a, params, max_block=2048, block_rows=None):
    """Pallas forward. s: [B, S], a: [B, A] (f32) -> q: [B, 1] (f32)."""
    global _cfg_idx
    B = s.shape[0]
    blk = _choose_block(B, max_block, block_rows)
    last_err = None
    for idx in range(_cfg_idx, len(_CONFIGS)):
        fuse, single_buf = _CONFIGS[idx]
        try:
            out = _forward_impl(s, a, params, blk=blk, fuse_layer1=fuse,
                                single_buffer_weights=single_buf)
            _cfg_idx = idx
            return out
        except Exception as err:          # feature unsupported by this Pallas/Mosaic build
            last_err = err
    raise last_err


# --------------------------------------------------------------------------- params / ref
def init_params(key, state_dim, action_dim, mid_dim):
    """nn.Linear-style init (U(+-1/sqrt(fan_in))).  Weights stored bf16 (MXU operands),
    biases f32.  Layouts: W as [in, out]; W1 concatenated over (state, action); W3 as a
    [1, mid] row; b3 as a [1] scalar."""
    in_dim = state_dim + action_dim
    k1w, k1b, k2w, k2b, k3w, k3b = jax.random.split(key, 6)
    b_in, b_mid = in_dim ** -0.5, mid_dim ** -0.5
    w1 = jax.random.uniform(k1w, (in_dim, mid_dim), jnp.float32, -b_in, b_in).astype(jnp.bfloat16)
    b1 = jax.random.uniform(k1b, (1, mid_dim), jnp.float32, -b_in, b_in)
    w2 = jax.random.uniform(k2w, (mid_dim, mid_dim), jnp.float32, -b_mid, b_mid).astype(jnp.bfloat16)
    b2 = jax.random.uniform(k2b, (1, mid_dim), jnp.float32, -b_mid, b_mid)
    w3 = jax.random.uniform(k3w, (1, mid_dim), jnp.float32, -b_mid, b_mid).astype(jnp.bfloat16)
    b3 = jax.random.uniform(k3b, (1,), jnp.float32, -b_mid, b_mid)
    return (w1, b1, w2, b2, w3, b3)


def reference_forward(s, a, params):
    """Plain-JAX reference with the same bf16-operand / f32-accumulate numerics."""
    w1, b1, w2, b2, w3, b3 = params
    x = jnp.concatenate([s, a], axis=1).astype(jnp.bfloat16)
    h1 = jnp.maximum(jnp.dot(x, w1, preferred_element_type=jnp.float32) + b1, 0.0)
    h2 = jnp.maximum(jnp.dot(h1.astype(jnp.bfloat16), w2,
                             preferred_element_type=jnp.float32) + b2, 0.0)
    return jnp.dot(h2.astype(jnp.bfloat16), w3.T, preferred_element_type=jnp.float32) + b3


# --------------------------------------------------------------------------- demo / check
if __name__ == "__main__":
    batch, state_dim, action_dim, mid_dim = 8, 12, 4, 32

    key = jax.random.PRNGKey(0)
    ks, ka, kp = jax.random.split(key, 3)
    s = jax.random.normal(ks, (batch, state_dim), jnp.float32)
    a = jax.random.normal(ka, (batch, action_dim), jnp.float32)
    params = init_params(kp, state_dim, action_dim, mid_dim)

    # Small-batch path (single block, block shapes equal to full dims).
    q = critic_forward(s, a, params)
    jax.block_until_ready(q)
    q_ref = reference_forward(s, a, params)
    assert q.shape == (batch, 1)
    assert jnp.allclose(q, q_ref, atol=5e-3, rtol=5e-3)

    # Multi-block path with a ragged edge (B=300, blk=128 -> grid=3, last block clipped).
    B2 = 300
    k2s, k2a = jax.random.split(jax.random.PRNGKey(1))
    s2 = jax.random.normal(k2s, (B2, state_dim), jnp.float32)
    a2 = jax.random.normal(k2a, (B2, action_dim), jnp.float32)
    q2 = critic_forward(s2, a2, params, block_rows=128)
    jax.block_until_ready(q2)
    q2_ref = reference_forward(s2, a2, params)
    assert q2.shape == (B2, 1)
    assert jnp.allclose(q2, q2_ref, atol=5e-3, rtol=5e-3)

    print("KERNEL_OK")
</pallas_src>

<mosaic_0001>
module attributes {stable_mosaic.version = 11 : i64} {
  func.func @_critic_kernel_fused(%arg0: i32, %arg1: memref<8x12xf32, #tpu.memory_space<vmem>>, %arg2: memref<8x4xf32, #tpu.memory_space<vmem>>, %arg3: memref<16x32xbf16, #tpu.memory_space<vmem>>, %arg4: memref<1x32xf32, #tpu.memory_space<vmem>>, %arg5: memref<32x32xbf16, #tpu.memory_space<vmem>>, %arg6: memref<1x32xf32, #tpu.memory_space<vmem>>, %arg7: memref<1x32xbf16, #tpu.memory_space<vmem>>, %arg8: memref<1xf32, #tpu.memory_space<smem>>, %arg9: memref<1x8xf32, #tpu.memory_space<vmem>>) attributes {dimension_semantics = [#tpu.dimension_semantics<parallel>], iteration_bounds = array<i64: 1>, scalar_prefetch = 0 : i64, scratch_operands = 0 : i64, tpu.core_type = #tpu.core_type<tc>, window_params = [{transform_indices = @transform_0, window_bounds = array<i64: 8, 12>}, {transform_indices = @transform_1, window_bounds = array<i64: 8, 4>}, {pipeline_mode = #tpu.pipeline_mode<synchronous>, transform_indices = @transform_2, window_bounds = array<i64: 16, 32>}, {pipeline_mode = #tpu.pipeline_mode<synchronous>, transform_indices = @transform_3, window_bounds = array<i64: 1, 32>}, {pipeline_mode = #tpu.pipeline_mode<synchronous>, transform_indices = @transform_4, window_bounds = array<i64: 32, 32>}, {pipeline_mode = #tpu.pipeline_mode<synchronous>, transform_indices = @transform_5, window_bounds = array<i64: 1, 32>}, {pipeline_mode = #tpu.pipeline_mode<synchronous>, transform_indices = @transform_6, window_bounds = array<i64: 1, 32>}, {transform_indices = @transform_7, window_bounds = array<i64: 1>}, {transform_indices = @transform_8, window_bounds = array<i64: 1, 8>}]} {
    %c0 = arith.constant 0 : index
    %c0_0 = arith.constant 0 : index
    %0 = vector.load %arg1[%c0, %c0_0] : memref<8x12xf32, #tpu.memory_space<vmem>>, vector<8x12xf32>
    %c0_1 = arith.constant 0 : index
    %c0_2 = arith.constant 0 : index
    %1 = vector.load %arg2[%c0_1, %c0_2] : memref<8x4xf32, #tpu.memory_space<vmem>>, vector<8x4xf32>
    %2 = tpu.concatenate %0, %1 in 1 : vector<8x12xf32>, vector<8x4xf32> -> vector<8x16xf32>
    %3 = arith.truncf %2 : vector<8x16xf32> to vector<8x16xbf16>
    %c0_3 = arith.constant 0 : index
    %c0_4 = arith.constant 0 : index
    %4 = vector.load %arg3[%c0_3, %c0_4] : memref<16x32xbf16, #tpu.memory_space<vmem>>, vector<16x32xbf16>
    %cst = arith.constant dense<0.000000e+00> : vector<8x32xf32>
    %5 = tpu.matmul %3, %4, %cst {dimension_numbers = #tpu.dot_dimension_numbers<[1], [0], [0], [1], [0, 0, 1, 1], [], []>} : vector<8x16xbf16>, vector<16x32xbf16>, vector<8x32xf32> -> vector<8x32xf32>
    %c0_5 = arith.constant 0 : index
    %c0_6 = arith.constant 0 : index
    %6 = vector.load %arg4[%c0_5, %c0_6] : memref<1x32xf32, #tpu.memory_space<vmem>>, vector<1x32xf32>
    %7 = vector.broadcast %6 : vector<1x32xf32> to vector<8x32xf32>
    %8 = arith.addf %5, %7 : vector<8x32xf32>
    %cst_7 = arith.constant 0.000000e+00 : f32
    %9 = vector.broadcast %cst_7 : f32 to vector<8x32xf32>
    %10 = arith.maximumf %8, %9 : vector<8x32xf32>
    %11 = arith.truncf %10 : vector<8x32xf32> to vector<8x32xbf16>
    %c0_8 = arith.constant 0 : index
    %c0_9 = arith.constant 0 : index
    %12 = vector.load %arg5[%c0_8, %c0_9] : memref<32x32xbf16, #tpu.memory_space<vmem>>, vector<32x32xbf16>
    %cst_10 = arith.constant dense<0.000000e+00> : vector<8x32xf32>
    %13 = tpu.matmul %11, %12, %cst_10 {dimension_numbers = #tpu.dot_dimension_numbers<[1], [0], [0], [1], [0, 0, 1, 1], [], []>} : vector<8x32xbf16>, vector<32x32xbf16>, vector<8x32xf32> -> vector<8x32xf32>
    %c0_11 = arith.constant 0 : index
    %c0_12 = arith.constant 0 : index
    %14 = vector.load %arg6[%c0_11, %c0_12] : memref<1x32xf32, #tpu.memory_space<vmem>>, vector<1x32xf32>
    %15 = vector.broadcast %14 : vector<1x32xf32> to vector<8x32xf32>
    %16 = arith.addf %13, %15 : vector<8x32xf32>
    %cst_13 = arith.constant 0.000000e+00 : f32
    %17 = vector.broadcast %cst_13 : f32 to vector<8x32xf32>
    %18 = arith.maximumf %16, %17 : vector<8x32xf32>
    %c0_14 = arith.constant 0 : index
    %c0_15 = arith.constant 0 : index
    %19 = vector.load %arg7[%c0_14, %c0_15] : memref<1x32xbf16, #tpu.memory_space<vmem>>, vector<1x32xbf16>
    %20 = arith.truncf %18 : vector<8x32xf32> to vector<8x32xbf16>
    %cst_16 = arith.constant dense<0.000000e+00> : vector<1x8xf32>
    %21 = tpu.matmul %19, %20, %cst_16 {dimension_numbers = #tpu.dot_dimension_numbers<[1], [1], [0], [0], [0, 0, 1, 0], [], []>} : vector<1x32xbf16>, vector<8x32xbf16>, vector<1x8xf32> -> vector<1x8xf32>
    %c0_17 = arith.constant 0 : index
    %22 = memref.load %arg8[%c0_17] : memref<1xf32, #tpu.memory_space<smem>>
    %23 = vector.broadcast %22 : f32 to vector<1x8xf32>
    %24 = arith.addf %21, %23 : vector<1x8xf32>
    %c0_18 = arith.constant 0 : index
    %c0_19 = arith.constant 0 : index
    %25 = vector.load %arg9[%c0_18, %c0_19] : memref<1x8xf32, #tpu.memory_space<vmem>>, vector<1x8xf32>
    tpu.vector_store %arg9[%c0_18, %c0_19], %24 {strides = array<i32>} : memref<1x8xf32, #tpu.memory_space<vmem>>, vector<1x8xf32>,
    return
  }
  func.func @transform_0(%arg0: i32) -> (i32, i32) {
    %c0_i32 = arith.constant 0 : i32
    %c0_i32_0 = arith.constant 0 : i32
    return %arg0, %c0_i32 : i32, i32
  }
  func.func @transform_1(%arg0: i32) -> (i32, i32) {
    %c0_i32 = arith.constant 0 : i32
    %c0_i32_0 = arith.constant 0 : i32
    return %arg0, %c0_i32 : i32, i32
  }
  func.func @transform_2(%arg0: i32) -> (i32, i32) {
    %c0_i32 = arith.constant 0 : i32
    %c0_i32_0 = arith.constant 0 : i32
    %c0_i32_1 = arith.constant 0 : i32
    return %c0_i32, %c0_i32_0 : i32, i32
  }
  func.func @transform_3(%arg0: i32) -> (i32, i32) {
    %c0_i32 = arith.constant 0 : i32
    %c0_i32_0 = arith.constant 0 : i32
    %c0_i32_1 = arith.constant 0 : i32
    return %c0_i32, %c0_i32_0 : i32, i32
  }
  func.func @transform_4(%arg0: i32) -> (i32, i32) {
    %c0_i32 = arith.constant 0 : i32
    %c0_i32_0 = arith.constant 0 : i32
    %c0_i32_1 = arith.constant 0 : i32
    return %c0_i32, %c0_i32_0 : i32, i32
  }
  func.func @transform_5(%arg0: i32) -> (i32, i32) {
    %c0_i32 = arith.constant 0 : i32
    %c0_i32_0 = arith.constant 0 : i32
    %c0_i32_1 = arith.constant 0 : i32
    return %c0_i32, %c0_i32_0 : i32, i32
  }
  func.func @transform_6(%arg0: i32) -> (i32, i32) {
    %c0_i32 = arith.constant 0 : i32
    %c0_i32_0 = arith.constant 0 : i32
    %c0_i32_1 = arith.constant 0 : i32
    return %c0_i32, %c0_i32_0 : i32, i32
  }
  func.func @transform_7(%arg0: i32) -> i32 {
    %c0_i32 = arith.constant 0 : i32
    %c0_i32_0 = arith.constant 0 : i32
    return %c0_i32 : i32
  }
  func.func @transform_8(%arg0: i32) -> (i32, i32) {
    %c0_i32 = arith.constant 0 : i32
    %c0_i32_0 = arith.constant 0 : i32
    return %c0_i32, %arg0 : i32, i32
  }
}

module attributes {stable_mosaic.version = 11 : i64} {
  func.func @_critic_kernel_fused(%arg0: i32, %arg1: memref<8x12xf32, #tpu.memory_space<vmem>>, %arg2: memref<8x4xf32, #tpu.memory_space<vmem>>, %arg3: memref<16x32xbf16, #tpu.memory_space<vmem>>, %arg4: memref<1x32xf32, #tpu.memory_space<vmem>>, %arg5: memref<32x32xbf16, #tpu.memory_space<vmem>>, %arg6: memref<1x32xf32, #tpu.memory_space<vmem>>, %arg7: memref<1x32xbf16, #tpu.memory_space<vmem>>, %arg8: memref<1xf32, #tpu.memory_space<smem>>, %arg9: memref<1x8xf32, #tpu.memory_space<vmem>>) attributes {dimension_semantics = [#tpu.dimension_semantics<parallel>], iteration_bounds = array<i64: 1>, scalar_prefetch = 0 : i64, scratch_operands = 0 : i64, tpu.core_type = #tpu.core_type<tc>, window_params = [{transform_indices = @transform_0, window_bounds = array<i64: 8, 12>}, {transform_indices = @transform_1, window_bounds = array<i64: 8, 4>}, {pipeline_mode = #tpu.pipeline_mode<synchronous>, transform_indices = @transform_2, window_bounds = array<i64: 16, 32>}, {pipeline_mode = #tpu.pipeline_mode<synchronous>, transform_indices = @transform_3, window_bounds = array<i64: 1, 32>}, {pipeline_mode = #tpu.pipeline_mode<synchronous>, transform_indices = @transform_4, window_bounds = array<i64: 32, 32>}, {pipeline_mode = #tpu.pipeline_mode<synchronous>, transform_indices = @transform_5, window_bounds = array<i64: 1, 32>}, {pipeline_mode = #tpu.pipeline_mode<synchronous>, transform_indices = @transform_6, window_bounds = array<i64: 1, 32>}, {transform_indices = @transform_7, window_bounds = array<i64: 1>}, {transform_indices = @transform_8, window_bounds = array<i64: 1, 8>}]} {
    %c0 = arith.constant 0 : index
    %c0_0 = arith.constant 0 : index
    %0 = vector.load %arg1[%c0, %c0_0] : memref<8x12xf32, #tpu.memory_space<vmem>>, vector<8x12xf32>
    %c0_1 = arith.constant 0 : index
    %c0_2 = arith.constant 0 : index
    %1 = vector.load %arg2[%c0_1, %c0_2] : memref<8x4xf32, #tpu.memory_space<vmem>>, vector<8x4xf32>
    %2 = tpu.concatenate %0, %1 in 1 : vector<8x12xf32>, vector<8x4xf32> -> vector<8x16xf32>
    %3 = arith.truncf %2 : vector<8x16xf32> to vector<8x16xbf16>
    %c0_3 = arith.constant 0 : index
    %c0_4 = arith.constant 0 : index
    %4 = vector.load %arg3[%c0_3, %c0_4] : memref<16x32xbf16, #tpu.memory_space<vmem>>, vector<16x32xbf16>
    %cst = arith.constant dense<0.000000e+00> : vector<8x32xf32>
    %5 = tpu.matmul %3, %4, %cst {dimension_numbers = #tpu.dot_dimension_numbers<[1], [0], [0], [1], [0, 0, 1, 1], [], []>} : vector<8x16xbf16>, vector<16x32xbf16>, vector<8x32xf32> -> vector<8x32xf32>
    %c0_5 = arith.constant 0 : index
    %c0_6 = arith.constant 0 : index
    %6 = vector.load %arg4[%c0_5, %c0_6] : memref<1x32xf32, #tpu.memory_space<vmem>>, vector<1x32xf32>
    %7 = vector.broadcast %6 : vector<1x32xf32> to vector<8x32xf32>
    %8 = arith.addf %5, %7 : vector<8x32xf32>
    %cst_7 = arith.constant 0.000000e+00 : f32
    %9 = vector.broadcast %cst_7 : f32 to vector<8x32xf32>
    %10 = arith.maximumf %8, %9 : vector<8x32xf32>
    %11 = arith.truncf %10 : vector<8x32xf32> to vector<8x32xbf16>
    %c0_8 = arith.constant 0 : index
    %c0_9 = arith.constant 0 : index
    %12 = vector.load %arg5[%c0_8, %c0_9] : memref<32x32xbf16, #tpu.memory_space<vmem>>, vector<32x32xbf16>
    %cst_10 = arith.constant dense<0.000000e+00> : vector<8x32xf32>
    %13 = tpu.matmul %11, %12, %cst_10 {dimension_numbers = #tpu.dot_dimension_numbers<[1], [0], [0], [1], [0, 0, 1, 1], [], []>} : vector<8x32xbf16>, vector<32x32xbf16>, vector<8x32xf32> -> vector<8x32xf32>
    %c0_11 = arith.constant 0 : index
    %c0_12 = arith.constant 0 : index
    %14 = vector.load %arg6[%c0_11, %c0_12] : memref<1x32xf32, #tpu.memory_space<vmem>>, vector<1x32xf32>
    %15 = vector.broadcast %14 : vector<1x32xf32> to vector<8x32xf32>
    %16 = arith.addf %13, %15 : vector<8x32xf32>
    %cst_13 = arith.constant 0.000000e+00 : f32
    %17 = vector.broadcast %cst_13 : f32 to vector<8x32xf32>
    %18 = arith.maximumf %16, %17 : vector<8x32xf32>
    %c0_14 = arith.constant 0 : index
    %c0_15 = arith.constant 0 : index
    %19 = vector.load %arg7[%c0_14, %c0_15] : memref<1x32xbf16, #tpu.memory_space<vmem>>, vector<1x32xbf16>
    %20 = arith.truncf %18 : vector<8x32xf32> to vector<8x32xbf16>
    %cst_16 = arith.constant dense<0.000000e+00> : vector<1x8xf32>
    %21 = tpu.matmul %19, %20, %cst_16 {dimension_numbers = #tpu.dot_dimension_numbers<[1], [1], [0], [0], [0, 0, 1, 0], [], []>} : vector<1x32xbf16>, vector<8x32xbf16>, vector<1x8xf32> -> vector<1x8xf32>
    %c0_17 = arith.constant 0 : index
    %22 = memref.load %arg8[%c0_17] : memref<1xf32, #tpu.memory_space<smem>>
    %23 = vector.broadcast %22 : f32 to vector<1x8xf32>
    %24 = arith.addf %21, %23 : vector<1x8xf32>
    %c0_18 = arith.constant 0 : index
    %c0_19 = arith.constant 0 : index
    %25 = vector.load %arg9[%c0_18, %c0_19] : memref<1x8xf32, #tpu.memory_space<vmem>>, vector<1x8xf32>
    tpu.vector_store %arg9[%c0_18, %c0_19], %24 {strides = array<i32>} : memref<1x8xf32, #tpu.memory_space<vmem>>, vector<1x8xf32>,
    return
  }
  func.func @transform_0(%arg0: i32) -> (i32, i32) {
    %c0_i32 = arith.constant 0 : i32
    %c0_i32_0 = arith.constant 0 : i32
    return %arg0, %c0_i32 : i32, i32
  }
  func.func @transform_1(%arg0: i32) -> (i32, i32) {
    %c0_i32 = arith.constant 0 : i32
    %c0_i32_0 = arith.constant 0 : i32
    return %arg0, %c0_i32 : i32, i32
  }
  func.func @transform_2(%arg0: i32) -> (i32, i32) {
    %c0_i32 = arith.constant 0 : i32
    %c0_i32_0 = arith.constant 0 : i32
    %c0_i32_1 = arith.constant 0 : i32
    return %c0_i32, %c0_i32_0 : i32, i32
  }
  func.func @transform_3(%arg0: i32) -> (i32, i32) {
    %c0_i32 = arith.constant 0 : i32
    %c0_i32_0 = arith.constant 0 : i32
    %c0_i32_1 = arith.constant 0 : i32
    return %c0_i32, %c0_i32_0 : i32, i32
  }
  func.func @transform_4(%arg0: i32) -> (i32, i32) {
    %c0_i32 = arith.constant 0 : i32
    %c0_i32_0 = arith.constant 0 : i32
    %c0_i32_1 = arith.constant 0 : i32
    return %c0_i32, %c0_i32_0 : i32, i32
  }
  func.func @transform_5(%arg0: i32) -> (i32, i32) {
    %c0_i32 = arith.constant 0 : i32
    %c0_i32_0 = arith.constant 0 : i32
    %c0_i32_1 = arith.constant 0 : i32
    return %c0_i32, %c0_i32_0 : i32, i32
  }
  func.func @transform_6(%arg0: i32) -> (i32, i32) {
    %c0_i32 = arith.constant 0 : i32
    %c0_i32_0 = arith.constant 0 : i32
    %c0_i32_1 = arith.constant 0 : i32
    return %c0_i32, %c0_i32_0 : i32, i32
  }
  func.func @transform_7(%arg0: i32) -> i32 {
    %c0_i32 = arith.constant 0 : i32
    %c0_i32_0 = arith.constant 0 : i32
    return %c0_i32 : i32
  }
  func.func @transform_8(%arg0: i32) -> (i32, i32) {
    %c0_i32 = arith.constant 0 : i32
    %c0_i32_0 = arith.constant 0 : i32
    return %c0_i32, %arg0 : i32, i32
  }
}

module attributes {stable_mosaic.version = 11 : i64} {
  func.func @_critic_kernel_split(%arg0: i32, %arg1: memref<8x12xf32, #tpu.memory_space<vmem>>, %arg2: memref<8x4xf32, #tpu.memory_space<vmem>>, %arg3: memref<12x32xbf16, #tpu.memory_space<vmem>>, %arg4: memref<4x32xbf16, #tpu.memory_space<vmem>>, %arg5: memref<1x32xf32, #tpu.memory_space<vmem>>, %arg6: memref<32x32xbf16, #tpu.memory_space<vmem>>, %arg7: memref<1x32xf32, #tpu.memory_space<vmem>>, %arg8: memref<1x32xbf16, #tpu.memory_space<vmem>>, %arg9: memref<1xf32, #tpu.memory_space<smem>>, %arg10: memref<1x8xf32, #tpu.memory_space<vmem>>) attributes {dimension_semantics = [#tpu.dimension_semantics<parallel>], iteration_bounds = array<i64: 1>, scalar_prefetch = 0 : i64, scratch_operands = 0 : i64, tpu.core_type = #tpu.core_type<tc>, window_params = [{transform_indices = @transform_0, window_bounds = array<i64: 8, 12>}, {transform_indices = @transform_1, window_bounds = array<i64: 8, 4>}, {pipeline_mode = #tpu.pipeline_mode<synchronous>, transform_indices = @transform_2, window_bounds = array<i64: 12, 32>}, {pipeline_mode = #tpu.pipeline_mode<synchronous>, transform_indices = @transform_3, window_bounds = array<i64: 4, 32>}, {pipeline_mode = #tpu.pipeline_mode<synchronous>, transform_indices = @transform_4, window_bounds = array<i64: 1, 32>}, {pipeline_mode = #tpu.pipeline_mode<synchronous>, transform_indices = @transform_5, window_bounds = array<i64: 32, 32>}, {pipeline_mode = #tpu.pipeline_mode<synchronous>, transform_indices = @transform_6, window_bounds = array<i64: 1, 32>}, {pipeline_mode = #tpu.pipeline_mode<synchronous>, transform_indices = @transform_7, window_bounds = array<i64: 1, 32>}, {transform_indices = @transform_8, window_bounds = array<i64: 1>}, {transform_indices = @transform_9, window_bounds = array<i64: 1, 8>}]} {
    %c0 = arith.constant 0 : index
    %c0_0 = arith.constant 0 : index
    %0 = vector.load %arg1[%c0, %c0_0] : memref<8x12xf32, #tpu.memory_space<vmem>>, vector<8x12xf32>
    %1 = arith.truncf %0 : vector<8x12xf32> to vector<8x12xbf16>
    %c0_1 = arith.constant 0 : index
    %c0_2 = arith.constant 0 : index
    %2 = vector.load %arg3[%c0_1, %c0_2] : memref<12x32xbf16, #tpu.memory_space<vmem>>, vector<12x32xbf16>
    %cst = arith.constant dense<0.000000e+00> : vector<8x32xf32>
    %3 = tpu.matmul %1, %2, %cst {dimension_numbers = #tpu.dot_dimension_numbers<[1], [0], [0], [1], [0, 0, 1, 1], [], []>} : vector<8x12xbf16>, vector<12x32xbf16>, vector<8x32xf32> -> vector<8x32xf32>
    %c0_3 = arith.constant 0 : index
    %c0_4 = arith.constant 0 : index
    %4 = vector.load %arg2[%c0_3, %c0_4] : memref<8x4xf32, #tpu.memory_space<vmem>>, vector<8x4xf32>
    %5 = arith.truncf %4 : vector<8x4xf32> to vector<8x4xbf16>
    %c0_5 = arith.constant 0 : index
    %c0_6 = arith.constant 0 : index
    %6 = vector.load %arg4[%c0_5, %c0_6] : memref<4x32xbf16, #tpu.memory_space<vmem>>, vector<4x32xbf16>
    %cst_7 = arith.constant dense<0.000000e+00> : vector<8x32xf32>
    %7 = tpu.matmul %5, %6, %cst_7 {dimension_numbers = #tpu.dot_dimension_numbers<[1], [0], [0], [1], [0, 0, 1, 1], [], []>} : vector<8x4xbf16>, vector<4x32xbf16>, vector<8x32xf32> -> vector<8x32xf32>
    %8 = arith.addf %3, %7 : vector<8x32xf32>
    %c0_8 = arith.constant 0 : index
    %c0_9 = arith.constant 0 : index
    %9 = vector.load %arg5[%c0_8, %c0_9] : memref<1x32xf32, #tpu.memory_space<vmem>>, vector<1x32xf32>
    %10 = vector.broadcast %9 : vector<1x32xf32> to vector<8x32xf32>
    %11 = arith.addf %8, %10 : vector<8x32xf32>
    %cst_10 = arith.constant 0.000000e+00 : f32
    %12 = vector.broadcast %cst_10 : f32 to vector<8x32xf32>
    %13 = arith.maximumf %11, %12 : vector<8x32xf32>
    %14 = arith.truncf %13 : vector<8x32xf32> to vector<8x32xbf16>
    %c0_11 = arith.constant 0 : index
    %c0_12 = arith.constant 0 : index
    %15 = vector.load %arg6[%c0_11, %c0_12] : memref<32x32xbf16, #tpu.memory_space<vmem>>, vector<32x32xbf16>
    %cst_13 = arith.constant dense<0.000000e+00> : vector<8x32xf32>
    %16 = tpu.matmul %14, %15, %cst_13 {dimension_numbers = #tpu.dot_dimension_numbers<[1], [0], [0], [1], [0, 0, 1, 1], [], []>} : vector<8x32xbf16>, vector<32x32xbf16>, vector<8x32xf32> -> vector<8x32xf32>
    %c0_14 = arith.constant 0 : index
    %c0_15 = arith.constant 0 : index
    %17 = vector.load %arg7[%c0_14, %c0_15] : memref<1x32xf32, #tpu.memory_space<vmem>>, vector<1x32xf32>
    %18 = vector.broadcast %17 : vector<1x32xf32> to vector<8x32xf32>
    %19 = arith.addf %16, %18 : vector<8x32xf32>
    %cst_16 = arith.constant 0.000000e+00 : f32
    %20 = vector.broadcast %cst_16 : f32 to vector<8x32xf32>
    %21 = arith.maximumf %19, %20 : vector<8x32xf32>
    %c0_17 = arith.constant 0 : index
    %c0_18 = arith.constant 0 : index
    %22 = vector.load %arg8[%c0_17, %c0_18] : memref<1x32xbf16, #tpu.memory_space<vmem>>, vector<1x32xbf16>
    %23 = arith.truncf %21 : vector<8x32xf32> to vector<8x32xbf16>
    %cst_19 = arith.constant dense<0.000000e+00> : vector<1x8xf32>
    %24 = tpu.matmul %22, %23, %cst_19 {dimension_numbers = #tpu.dot_dimension_numbers<[1], [1], [0], [0], [0, 0, 1, 0], [], []>} : vector<1x32xbf16>, vector<8x32xbf16>, vector<1x8xf32> -> vector<1x8xf32>
    %c0_20 = arith.constant 0 : index
    %25 = memref.load %arg9[%c0_20] : memref<1xf32, #tpu.memory_space<smem>>
    %26 = vector.broadcast %25 : f32 to vector<1x8xf32>
    %27 = arith.addf %24, %26 : vector<1x8xf32>
    %c0_21 = arith.constant 0 : index
    %c0_22 = arith.constant 0 : index
    %28 = vector.load %arg10[%c0_21, %c0_22] : memref<1x8xf32, #tpu.memory_space<vmem>>, vector<1x8xf32>
    tpu.vector_store %arg10[%c0_21, %c0_22], %27 {strides = array<i32>} : memref<1x8xf32, #tpu.memory_space<vmem>>, vector<1x8xf32>,
    return
  }
  func.func @transform_0(%arg0: i32) -> (i32, i32) {
    %c0_i32 = arith.constant 0 : i32
    %c0_i32_0 = arith.constant 0 : i32
    return %arg0, %c0_i32 : i32, i32
  }
  func.func @transform_1(%arg0: i32) -> (i32, i32) {
    %c0_i32 = arith.constant 0 : i32
    %c0_i32_0 = arith.constant 0 : i32
    return %arg0, %c0_i32 : i32, i32
  }
  func.func @transform_2(%arg0: i32) -> (i32, i32) {
    %c0_i32 = arith.constant 0 : i32
    %c0_i32_0 = arith.constant 0 : i32
    %c0_i32_1 = arith.constant 0 : i32
    return %c0_i32, %c0_i32_0 : i32, i32
  }
  func.func @transform_3(%arg0: i32) -> (i32, i32) {
    %c0_i32 = arith.constant 0 : i32
    %c0_i32_0 = arith.constant 0 : i32
    %c0_i32_1 = arith.constant 0 : i32
    return %c0_i32, %c0_i32_0 : i32, i32
  }
  func.func @transform_4(%arg0: i32) -> (i32, i32) {
    %c0_i32 = arith.constant 0 : i32
    %c0_i32_0 = arith.constant 0 : i32
    %c0_i32_1 = arith.constant 0 : i32
    return %c0_i32, %c0_i32_0 : i32, i32
  }
  func.func @transform_5(%arg0: i32) -> (i32, i32) {
    %c0_i32 = arith.constant 0 : i32
    %c0_i32_0 = arith.constant 0 : i32
    %c0_i32_1 = arith.constant 0 : i32
    return %c0_i32, %c0_i32_0 : i32, i32
  }
  func.func @transform_6(%arg0: i32) -> (i32, i32) {
    %c0_i32 = arith.constant 0 : i32
    %c0_i32_0 = arith.constant 0 : i32
    %c0_i32_1 = arith.constant 0 : i32
    return %c0_i32, %c0_i32_0 : i32, i32
  }
  func.func @transform_7(%arg0: i32) -> (i32, i32) {
    %c0_i32 = arith.constant 0 : i32
    %c0_i32_0 = arith.constant 0 : i32
    %c0_i32_1 = arith.constant 0 : i32
    return %c0_i32, %c0_i32_0 : i32, i32
  }
  func.func @transform_8(%arg0: i32) -> i32 {
    %c0_i32 = arith.constant 0 : i32
    %c0_i32_0 = arith.constant 0 : i32
    return %c0_i32 : i32
  }
  func.func @transform_9(%arg0: i32) -> (i32, i32) {
    %c0_i32 = arith.constant 0 : i32
    %c0_i32_0 = arith.constant 0 : i32
    return %c0_i32, %arg0 : i32, i32
  }
}

module attributes {stable_mosaic.version = 11 : i64} {
  func.func @_critic_kernel_split(%arg0: i32, %arg1: memref<8x12xf32, #tpu.memory_space<vmem>>, %arg2: memref<8x4xf32, #tpu.memory_space<vmem>>, %arg3: memref<12x32xbf16, #tpu.memory_space<vmem>>, %arg4: memref<4x32xbf16, #tpu.memory_space<vmem>>, %arg5: memref<1x32xf32, #tpu.memory_space<vmem>>, %arg6: memref<32x32xbf16, #tpu.memory_space<vmem>>, %arg7: memref<1x32xf32, #tpu.memory_space<vmem>>, %arg8: memref<1x32xbf16, #tpu.memory_space<vmem>>, %arg9: memref<1xf32, #tpu.memory_space<smem>>, %arg10: memref<1x8xf32, #tpu.memory_space<vmem>>) attributes {dimension_semantics = [#tpu.dimension_semantics<parallel>], iteration_bounds = array<i64: 1>, scalar_prefetch = 0 : i64, scratch_operands = 0 : i64, tpu.core_type = #tpu.core_type<tc>, window_params = [{transform_indices = @transform_0, window_bounds = array<i64: 8, 12>}, {transform_indices = @transform_1, window_bounds = array<i64: 8, 4>}, {pipeline_mode = #tpu.pipeline_mode<synchronous>, transform_indices = @transform_2, window_bounds = array<i64: 12, 32>}, {pipeline_mode = #tpu.pipeline_mode<synchronous>, transform_indices = @transform_3, window_bounds = array<i64: 4, 32>}, {pipeline_mode = #tpu.pipeline_mode<synchronous>, transform_indices = @transform_4, window_bounds = array<i64: 1, 32>}, {pipeline_mode = #tpu.pipeline_mode<synchronous>, transform_indices = @transform_5, window_bounds = array<i64: 32, 32>}, {pipeline_mode = #tpu.pipeline_mode<synchronous>, transform_indices = @transform_6, window_bounds = array<i64: 1, 32>}, {pipeline_mode = #tpu.pipeline_mode<synchronous>, transform_indices = @transform_7, window_bounds = array<i64: 1, 32>}, {transform_indices = @transform_8, window_bounds = array<i64: 1>}, {transform_indices = @transform_9, window_bounds = array<i64: 1, 8>}]} {
    %c0 = arith.constant 0 : index
    %c0_0 = arith.constant 0 : index
    %0 = vector.load %arg1[%c0, %c0_0] : memref<8x12xf32, #tpu.memory_space<vmem>>, vector<8x12xf32>
    %1 = arith.truncf %0 : vector<8x12xf32> to vector<8x12xbf16>
    %c0_1 = arith.constant 0 : index
    %c0_2 = arith.constant 0 : index
    %2 = vector.load %arg3[%c0_1, %c0_2] : memref<12x32xbf16, #tpu.memory_space<vmem>>, vector<12x32xbf16>
    %cst = arith.constant dense<0.000000e+00> : vector<8x32xf32>
    %3 = tpu.matmul %1, %2, %cst {dimension_numbers = #tpu.dot_dimension_numbers<[1], [0], [0], [1], [0, 0, 1, 1], [], []>} : vector<8x12xbf16>, vector<12x32xbf16>, vector<8x32xf32> -> vector<8x32xf32>
    %c0_3 = arith.constant 0 : index
    %c0_4 = arith.constant 0 : index
    %4 = vector.load %arg2[%c0_3, %c0_4] : memref<8x4xf32, #tpu.memory_space<vmem>>, vector<8x4xf32>
    %5 = arith.truncf %4 : vector<8x4xf32> to vector<8x4xbf16>
    %c0_5 = arith.constant 0 : index
    %c0_6 = arith.constant 0 : index
    %6 = vector.load %arg4[%c0_5, %c0_6] : memref<4x32xbf16, #tpu.memory_space<vmem>>, vector<4x32xbf16>
    %cst_7 = arith.constant dense<0.000000e+00> : vector<8x32xf32>
    %7 = tpu.matmul %5, %6, %cst_7 {dimension_numbers = #tpu.dot_dimension_numbers<[1], [0], [0], [1], [0, 0, 1, 1], [], []>} : vector<8x4xbf16>, vector<4x32xbf16>, vector<8x32xf32> -> vector<8x32xf32>
    %8 = arith.addf %3, %7 : vector<8x32xf32>
    %c0_8 = arith.constant 0 : index
    %c0_9 = arith.constant 0 : index
    %9 = vector.load %arg5[%c0_8, %c0_9] : memref<1x32xf32, #tpu.memory_space<vmem>>, vector<1x32xf32>
    %10 = vector.broadcast %9 : vector<1x32xf32> to vector<8x32xf32>
    %11 = arith.addf %8, %10 : vector<8x32xf32>
    %cst_10 = arith.constant 0.000000e+00 : f32
    %12 = vector.broadcast %cst_10 : f32 to vector<8x32xf32>
    %13 = arith.maximumf %11, %12 : vector<8x32xf32>
    %14 = arith.truncf %13 : vector<8x32xf32> to vector<8x32xbf16>
    %c0_11 = arith.constant 0 : index
    %c0_12 = arith.constant 0 : index
    %15 = vector.load %arg6[%c0_11, %c0_12] : memref<32x32xbf16, #tpu.memory_space<vmem>>, vector<32x32xbf16>
    %cst_13 = arith.constant dense<0.000000e+00> : vector<8x32xf32>
    %16 = tpu.matmul %14, %15, %cst_13 {dimension_numbers = #tpu.dot_dimension_numbers<[1], [0], [0], [1], [0, 0, 1, 1], [], []>} : vector<8x32xbf16>, vector<32x32xbf16>, vector<8x32xf32> -> vector<8x32xf32>
    %c0_14 = arith.constant 0 : index
    %c0_15 = arith.constant 0 : index
    %17 = vector.load %arg7[%c0_14, %c0_15] : memref<1x32xf32, #tpu.memory_space<vmem>>, vector<1x32xf32>
    %18 = vector.broadcast %17 : vector<1x32xf32> to vector<8x32xf32>
    %19 = arith.addf %16, %18 : vector<8x32xf32>
    %cst_16 = arith.constant 0.000000e+00 : f32
    %20 = vector.broadcast %cst_16 : f32 to vector<8x32xf32>
    %21 = arith.maximumf %19, %20 : vector<8x32xf32>
    %c0_17 = arith.constant 0 : index
    %c0_18 = arith.constant 0 : index
    %22 = vector.load %arg8[%c0_17, %c0_18] : memref<1x32xbf16, #tpu.memory_space<vmem>>, vector<1x32xbf16>
    %23 = arith.truncf %21 : vector<8x32xf32> to vector<8x32xbf16>
    %cst_19 = arith.constant dense<0.000000e+00> : vector<1x8xf32>
    %24 = tpu.matmul %22, %23, %cst_19 {dimension_numbers = #tpu.dot_dimension_numbers<[1], [1], [0], [0], [0, 0, 1, 0], [], []>} : vector<1x32xbf16>, vector<8x32xbf16>, vector<1x8xf32> -> vector<1x8xf32>
    %c0_20 = arith.constant 0 : index
    %25 = memref.load %arg9[%c0_20] : memref<1xf32, #tpu.memory_space<smem>>
    %26 = vector.broadcast %25 : f32 to vector<1x8xf32>
    %27 = arith.addf %24, %26 : vector<1x8xf32>
    %c0_21 = arith.constant 0 : index
    %c0_22 = arith.constant 0 : index
    %28 = vector.load %arg10[%c0_21, %c0_22] : memref<1x8xf32, #tpu.memory_space<vmem>>, vector<1x8xf32>
    tpu.vector_store %arg10[%c0_21, %c0_22], %27 {strides = array<i32>} : memref<1x8xf32, #tpu.memory_space<vmem>>, vector<1x8xf32>,
    return
  }
  func.func @transform_0(%arg0: i32) -> (i32, i32) {
    %c0_i32 = arith.constant 0 : i32
    %c0_i32_0 = arith.constant 0 : i32
    return %arg0, %c0_i32 : i32, i32
  }
  func.func @transform_1(%arg0: i32) -> (i32, i32) {
    %c0_i32 = arith.constant 0 : i32
    %c0_i32_0 = arith.constant 0 : i32
    return %arg0, %c0_i32 : i32, i32
  }
  func.func @transform_2(%arg0: i32) -> (i32, i32) {
    %c0_i32 = arith.constant 0 : i32
    %c0_i32_0 = arith.constant 0 : i32
    %c0_i32_1 = arith.constant 0 : i32
    return %c0_i32, %c0_i32_0 : i32, i32
  }
  func.func @transform_3(%arg0: i32) -> (i32, i32) {
    %c0_i32 = arith.constant 0 : i32
    %c0_i32_0 = arith.constant 0 : i32
    %c0_i32_1 = arith.constant 0 : i32
    return %c0_i32, %c0_i32_0 : i32, i32
  }
  func.func @transform_4(%arg0: i32) -> (i32, i32) {
    %c0_i32 = arith.constant 0 : i32
    %c0_i32_0 = arith.constant 0 : i32
    %c0_i32_1 = arith.constant 0 : i32
    return %c0_i32, %c0_i32_0 : i32, i32
  }
  func.func @transform_5(%arg0: i32) -> (i32, i32) {
    %c0_i32 = arith.constant 0 : i32
    %c0_i32_0 = arith.constant 0 : i32
    %c0_i32_1 = arith.constant 0 : i32
    return %c0_i32, %c0_i32_0 : i32, i32
  }
  func.func @transform_6(%arg0: i32) -> (i32, i32) {
    %c0_i32 = arith.constant 0 : i32
    %c0_i32_0 = arith.constant 0 : i32
    %c0_i32_1 = arith.constant 0 : i32
    return %c0_i32, %c0_i32_0 : i32, i32
  }
  func.func @transform_7(%arg0: i32) -> (i32, i32) {
    %c0_i32 = arith.constant 0 : i32
    %c0_i32_0 = arith.constant 0 : i32
    %c0_i32_1 = arith.constant 0 : i32
    return %c0_i32, %c0_i32_0 : i32, i32
  }
  func.func @transform_8(%arg0: i32) -> i32 {
    %c0_i32 = arith.constant 0 : i32
    %c0_i32_0 = arith.constant 0 : i32
    return %c0_i32 : i32
  }
  func.func @transform_9(%arg0: i32) -> (i32, i32) {
    %c0_i32 = arith.constant 0 : i32
    %c0_i32_0 = arith.constant 0 : i32
    return %c0_i32, %arg0 : i32, i32
  }
}

</mosaic_0001>

<llo_original>
// kernel: tpu_custom_call.1
$region0: #{tpu_custom_call.1}
  #allocation0 [shape = 'u32[]', space=smem, size = 0x4, offset = 0x4, fixed_abs, tag = 'smem constant byte address 0x4 - core index']
  #allocation1 [shape = 'u32[72,128]{1,0:T(1,128)}', space=vmem, size = 0x9000, scoped, tag = 'internal scratch']
  #allocation2 [shape = 'f32[1]{0:T(128)S(6)}', space=smem, size = 0x200, scoped, tag = 'scoped memory for tpu_custom_call.1']
  %s0 = inlined_call_operand.hbm [shape: f32[8,12], index: 0, kind: input, shape index: {}]
  %s1 = inlined_call_operand.vmem [shape: f32[8,4], index: 1, kind: input, shape index: {}]
  %s2 = inlined_call_operand.hbm [shape: bf16[16,32], index: 2, kind: input, shape index: {}]
  %s3 = inlined_call_operand.vmem [shape: f32[1,32], index: 3, kind: input, shape index: {}]
  %s4 = inlined_call_operand.vmem [shape: bf16[32,32], index: 4, kind: input, shape index: {}]
  %s5 = inlined_call_operand.vmem [shape: f32[1,32], index: 5, kind: input, shape index: {}]
  %s6 = inlined_call_operand.vmem [shape: bf16[1,32], index: 6, kind: input, shape index: {}]
  %s7 = inlined_call_operand.<no memory space> [shape: f32[1], index: 7, kind: input, shape index: {}]
  %s8 = inlined_call_operand.hbm [shape: f32[1,8], index: 8, kind: output, shape index: {}]
  %s9 = sld [smem:[#allocation0]]
  $region50: #{tpu_custom_call.1} parent=0
    _
  %s11 = ssub.s32 1, %s9
  %s12 = scalar_select 0, %s11, %s9
  %13 = sst [smem:[#allocation2]] %s7
  $region1: #{tpu_custom_call.1} parent=0
    #allocation3 [shape = 'u8[4096]{0}', space=vmem, size = 0x1000, scoped, tag = 'input window, operand 0, single buffered']
    #allocation4 [shape = 's32[1]{0}', space=sflag, size = 0x4, scoped, tag = 'scoped memory for tpu_custom_call.1']
    #allocation5 [shape = 's32[1]{0}', space=sflag, size = 0x4, scoped, tag = 'scoped memory for tpu_custom_call.1']
    #allocation6 [shape = 'u8[4096]{0}', space=vmem, size = 0x1000, scoped, tag = 'input window, operand 2, single buffered']
    #allocation7 [shape = 's32[1]{0}', space=sflag, size = 0x4, scoped, tag = 'scoped memory for tpu_custom_call.1']
    #allocation8 [shape = 'u8[512]{0}', space=vmem, size = 0x400, scoped, tag = 'output window, operand 0, single buffered']
    %14 = vsyncpa [#allocation4], 0
    %15 = vsyncpa [#allocation7], 0
    %16 = vsyncpa [#allocation5], 0
    // Predicated region
    $region2: #{tpu_custom_call.1} parent=1 // pred_check
      _
    $region3: #{tpu_custom_call.1} parent=1 // pred_check_branch
      %18 = sbr.rel (0) target = $region5
    $region4: #{tpu_custom_call.1} parent=1 // pred_region
      %20 = vsyncadd [#allocation4], 0
      %s22 = sshll.u32 %s0, 4
      %s23 = int_to_ptr.hbm [resolvable:$true] %s22
      %s24 = sshll.u32 [#allocation3], 4
      %s25 = int_to_ptr.vmem [resolvable:$true] %s24
      %27 = dma.hbm_to_vmem [thread:$0]  %s23, 128, %s25, [#allocation4]
    $region5: #{tpu_custom_call.1} parent=1 // pred_fallthru
      _
    // Predicated region
    $region6: #{tpu_custom_call.1} parent=1 // pred_check
      _
    $region7: #{tpu_custom_call.1} parent=1 // pred_check_branch
      %29 = sbr.rel (0) target = $region9
    $region8: #{tpu_custom_call.1} parent=1 // pred_region
      _
    $region9: #{tpu_custom_call.1} parent=1 // pred_fallthru
      _
    // Predicated region
    $region10: #{tpu_custom_call.1} parent=1 // pred_check
      _
    $region11: #{tpu_custom_call.1} parent=1 // pred_check_branch
      %31 = sbr.rel (0) target = $region13
    $region12: #{tpu_custom_call.1} parent=1 // pred_region
      %33 = vsyncadd [#allocation7], 0
      %s34 = sshll.u32 %s2, 4
      %s35 = int_to_ptr.hbm [resolvable:$true] %s34
      %s36 = sshll.u32 [#allocation6], 4
      %s37 = int_to_ptr.vmem [resolvable:$true] %s36
      %42 = dma.hbm_to_vmem [thread:$0]  %s35, 128, %s37, [#allocation7], 64, 64, 4
    $region13: #{tpu_custom_call.1} parent=1 // pred_fallthru
      _
    // Predicated region
    $region14: #{tpu_custom_call.1} parent=1 // pred_check
      _
    $region15: #{tpu_custom_call.1} parent=1 // pred_check_branch
      %44 = sbr.rel (0) target = $region17
    $region16: #{tpu_custom_call.1} parent=1 // pred_region
      _
    $region17: #{tpu_custom_call.1} parent=1 // pred_fallthru
      _
    // Predicated region
    $region18: #{tpu_custom_call.1} parent=1 // pred_check
      _
    $region19: #{tpu_custom_call.1} parent=1 // pred_check_branch
      %46 = sbr.rel (0) target = $region21
    $region20: #{tpu_custom_call.1} parent=1 // pred_region
      _
    $region21: #{tpu_custom_call.1} parent=1 // pred_fallthru
      _
    // Predicated region
    $region22: #{tpu_custom_call.1} parent=1 // pred_check
      _
    $region23: #{tpu_custom_call.1} parent=1 // pred_check_branch
      %48 = sbr.rel (0) target = $region25
    $region24: #{tpu_custom_call.1} parent=1 // pred_region
      _
    $region25: #{tpu_custom_call.1} parent=1 // pred_fallthru
      _
    // Predicated region
    $region26: #{tpu_custom_call.1} parent=1 // pred_check
      _
    $region27: #{tpu_custom_call.1} parent=1 // pred_check_branch
      %50 = sbr.rel (0) target = $region29
    $region28: #{tpu_custom_call.1} parent=1 // pred_region
      _
    $region29: #{tpu_custom_call.1} parent=1 // pred_fallthru
      _
    // Predicated region
    $region30: #{tpu_custom_call.1} parent=1 // pred_check
      _
    $region31: #{tpu_custom_call.1} parent=1 // pred_check_branch
      %52 = sbr.rel (0) target = $region33
    $region32: #{tpu_custom_call.1} parent=1 // pred_region
      _
    $region33: #{tpu_custom_call.1} parent=1 // pred_fallthru
      _
    // Predicated region
    $region34: #{tpu_custom_call.1} parent=1 // pred_check
      _
    $region35: #{tpu_custom_call.1} parent=1 // pred_check_branch
      %54 = sbr.rel (0) target = $region37
    $region36: #{tpu_custom_call.1} parent=1 // pred_region
      %56 = dma.done [#allocation4], 128
    $region37: #{tpu_custom_call.1} parent=1 // pred_fallthru
      _
    // Predicated region
    $region38: #{tpu_custom_call.1} parent=1 // pred_check
      _
    $region39: #{tpu_custom_call.1} parent=1 // pred_check_branch
      %58 = sbr.rel (0) target = $region41
    $region40: #{tpu_custom_call.1} parent=1 // pred_region
      %60 = dma.done [#allocation7], 128
    $region41: #{tpu_custom_call.1} parent=1 // pred_fallthru
      _
    %v62 = vld [vmem:[#allocation3] sm:$0xff]
    %v63 = vld [vmem:[%s1] sm:$0xff]
    %65 = vrot.lane.b32.xlu0 %v63, 12
    %v66 = vpop.permute.xlu0 %65
    %vm68 = vcmask 97280
    %v69 = vsel %vm68, %v62, %v66
    %v70 = vpack.c.bf16 %v69, %v69
    %v71 = vld [vmem:[#allocation6] sm:$0xf]
    %v72 = vld [vmem:[#allocation6 + $0x4] sm:$0xf]
    %v73 = vld [vmem:[%s3] sm:$0x1]
    %v75 = vperm.slane %v73, 0
    %v79 = vunpack.c.l.b16 %v71
    %v80 = vunpack.c.l.b16 %v72
    %v81 = vpack.c.b16 %v80, %v79
    %vm83 = vcmask 130048
    %v85 = vsel %vm83, %v70, 0
    %87 = vmatpush.bf16.msra.mxu0 0
    %88 = vmatpush.bf16.msra.mxu0 0
    %89 = vmatpush.bf16.msra.mxu0 0
    %90 = vmatpush.bf16.msra.mxu0 0
    %91 = vmatpush.bf16.msra.mxu0 0
    %92 = vmatpush.bf16.msra.mxu0 0
    %93 = vmatpush.bf16.msra.mxu0 0
    %94 = vmatpush.bf16.msra.mxu0 %v81
    %95 = vmatmul.bf16.gmra.mxu0 %v85
    %v96 = vpop.f32.mrf.mxu0
    %v97 = vadd.f32 %v75, %v96
    %v98 = vpop.f32.mrf.mxu0
    %99 = vdwg.mxu0
    %v100 = vmax.f32 %v97, 0.0
    %v101 = vpack.c.bf16 %v100, %v100
    %v102 = vld [vmem:[%s4] sm:$0xf]
    %v103 = vld [vmem:[%s4 + $0x4] sm:$0xf]
    %v104 = vld [vmem:[%s4 + $0x8] sm:$0xf]
    %v105 = vld [vmem:[%s4 + $0xc] sm:$0xf]
    %v106 = vld [vmem:[%s5] sm:$0x1]
    %v108 = vperm.slane %v106, 0
    %v114 = vunpack.c.l.b16 %v102
    %v115 = vunpack.c.l.b16 %v103
    %v116 = vunpack.c.l.b16 %v104
    %v117 = vunpack.c.l.b16 %v105
    %v118 = vpack.c.b16 %v115, %v114
    %v119 = vpack.c.b16 %v117, %v116
    %vm122 = vcmask 261120
    %v124 = vsel %vm122, %v101, 0
    %126 = vmatpush.bf16.msra.mxu0 0
    %127 = vmatpush.bf16.msra.mxu0 0
    %128 = vmatpush.bf16.msra.mxu0 0
    %129 = vmatpush.bf16.msra.mxu0 0
    %130 = vmatpush.bf16.msra.mxu0 0
    %131 = vmatpush.bf16.msra.mxu0 0
    %132 = vmatpush.bf16.msra.mxu0 %v119
    %133 = vmatpush.bf16.msra.mxu0 %v118
    %134 = vmatmul.bf16.gmra.mxu0 %v124
    %v135 = vpop.f32.mrf.mxu0
    %v136 = vadd.f32 %v108, %v135
    %v137 = vpop.f32.mrf.mxu0
    %138 = vdwg.mxu0
    %v139 = vmax.f32 %v136, 0.0
    %v140 = vld [vmem:[%s6] sm:$0x1]
    %v141 = vpack.c.bf16 %v139, %v139
    %s142 = sld [smem:[#allocation2]]
    %v143 = vstv %s142
    %v145 = vsel %vm122, %v140, 0
    %v148 = vsel %vm122, %v141, 0
    %150 = vmatpush.bf16.xpose.msra.mxu0 0
    %151 = vmatpush.bf16.xpose.msra.mxu0 0
    %152 = vmatpush.bf16.xpose.msra.mxu0 0
    %153 = vmatpush.bf16.xpose.msra.mxu0 0
    %154 = vmatpush.bf16.xpose.msra.mxu0 0
    %155 = vmatpush.bf16.xpose.msra.mxu0 0
    %156 = vmatpush.bf16.xpose.msra.mxu0 0
    %157 = vmatpush.bf16.xpose.msra.mxu0 %v148
    %158 = vmatmul.bf16.gmra.mxu0 %v145
    %v159 = vpop.f32.mrf.mxu0
    %v160 = vadd.f32 %v143, %v159
    %v161 = vpop.f32.mrf.mxu0
    %162 = vdwg.mxu0
    %vm163 = vcmask 57344
    %164 = vst.msk [vmem:[#allocation8] sm:$0x1] %vm163, %v160
    // Predicated region
    $region42: #{tpu_custom_call.1} parent=1 // pred_check
      _
    $region43: #{tpu_custom_call.1} parent=1 // pred_check_branch
      %166 = sbr.rel (0) target = $region45
    $region44: #{tpu_custom_call.1} parent=1 // pred_region
      %168 = vsyncadd [#allocation5], 0
      %s170 = sshll.u32 [#allocation8], 4
      %s171 = int_to_ptr.vmem [resolvable:$true] %s170
      %s172 = sshll.u32 %s8, 4
      %s173 = int_to_ptr.hbm [resolvable:$true] %s172
      %175 = dma.vmem_to_hbm [thread:$0]  %s171, 16, %s173, [#allocation5]
    $region45: #{tpu_custom_call.1} parent=1 // pred_fallthru
      _
    // Predicated region
    $region46: #{tpu_custom_call.1} parent=1 // pred_check
      _
    $region47: #{tpu_custom_call.1} parent=1 // pred_check_branch
      %177 = sbr.rel (0) target = $region49
    $region48: #{tpu_custom_call.1} parent=1 // pred_region
      %179 = dma.done [#allocation5], 16
    $region49: #{tpu_custom_call.1} parent=1 // pred_fallthru
      _
    %180 = vsyncpa [#allocation4], 1
    %181 = vsyncpa [#allocation7], 1
    %182 = vsyncpa [#allocation5], 1

// kernel: tpu_custom_call.1
$region0: #{tpu_custom_call.1}
  #allocation0 [shape = 'u32[]', space=smem, size = 0x4, offset = 0x4, fixed_abs, tag = 'smem constant byte address 0x4 - core index']
  #allocation1 [shape = 'u32[72,128]{1,0:T(1,128)}', space=vmem, size = 0x9000, scoped, tag = 'internal scratch']
  #allocation2 [shape = 'f32[1]{0:T(128)S(6)}', space=smem, size = 0x200, scoped, tag = 'scoped memory for tpu_custom_call.1']
  %s0 = inlined_call_operand.hbm [shape: f32[8,12], index: 0, kind: input, shape index: {}]
  %s1 = inlined_call_operand.vmem [shape: f32[8,4], index: 1, kind: input, shape index: {}]
  %s2 = inlined_call_operand.hbm [shape: bf16[16,32], index: 2, kind: input, shape index: {}]
  %s3 = inlined_call_operand.vmem [shape: f32[1,32], index: 3, kind: input, shape index: {}]
  %s4 = inlined_call_operand.vmem [shape: bf16[32,32], index: 4, kind: input, shape index: {}]
  %s5 = inlined_call_operand.vmem [shape: f32[1,32], index: 5, kind: input, shape index: {}]
  %s6 = inlined_call_operand.vmem [shape: bf16[1,32], index: 6, kind: input, shape index: {}]
  %s7 = inlined_call_operand.<no memory space> [shape: f32[1], index: 7, kind: input, shape index: {}]
  %s8 = inlined_call_operand.hbm [shape: f32[1,8], index: 8, kind: output, shape index: {}]
  %s9 = sld [smem:[#allocation0]]
  $region50: #{tpu_custom_call.1} parent=0
    _
  %s11 = ssub.s32 1, %s9
  %s12 = scalar_select 0, %s11, %s9
  %13 = sst [smem:[#allocation2]] %s7
  $region1: #{tpu_custom_call.1} parent=0
    #allocation3 [shape = 'u8[4096]{0}', space=vmem, size = 0x1000, scoped, tag = 'input window, operand 0, single buffered']
    #allocation4 [shape = 's32[1]{0}', space=sflag, size = 0x4, scoped, tag = 'scoped memory for tpu_custom_call.1']
    #allocation5 [shape = 's32[1]{0}', space=sflag, size = 0x4, scoped, tag = 'scoped memory for tpu_custom_call.1']
    #allocation6 [shape = 'u8[4096]{0}', space=vmem, size = 0x1000, scoped, tag = 'input window, operand 2, single buffered']
    #allocation7 [shape = 's32[1]{0}', space=sflag, size = 0x4, scoped, tag = 'scoped memory for tpu_custom_call.1']
    #allocation8 [shape = 'u8[512]{0}', space=vmem, size = 0x400, scoped, tag = 'output window, operand 0, single buffered']
    %14 = vsyncpa [#allocation4], 0
    %15 = vsyncpa [#allocation7], 0
    %16 = vsyncpa [#allocation5], 0
    // Predicated region
    $region2: #{tpu_custom_call.1} parent=1 // pred_check
      _
    $region3: #{tpu_custom_call.1} parent=1 // pred_check_branch
      %18 = sbr.rel (0) target = $region5
    $region4: #{tpu_custom_call.1} parent=1 // pred_region
      %20 = vsyncadd [#allocation4], 0
      %s22 = sshll.u32 %s0, 4
      %s23 = int_to_ptr.hbm [resolvable:$true] %s22
      %s24 = sshll.u32 [#allocation3], 4
      %s25 = int_to_ptr.vmem [resolvable:$true] %s24
      %27 = dma.hbm_to_vmem [thread:$0]  %s23, 128, %s25, [#allocation4]
    $region5: #{tpu_custom_call.1} parent=1 // pred_fallthru
      _
    // Predicated region
    $region6: #{tpu_custom_call.1} parent=1 // pred_check
      _
    $region7: #{tpu_custom_call.1} parent=1 // pred_check_branch
      %29 = sbr.rel (0) target = $region9
    $region8: #{tpu_custom_call.1} parent=1 // pred_region
      _
    $region9: #{tpu_custom_call.1} parent=1 // pred_fallthru
      _
    // Predicated region
    $region10: #{tpu_custom_call.1} parent=1 // pred_check
      _
    $region11: #{tpu_custom_call.1} parent=1 // pred_check_branch
      %31 = sbr.rel (0) target = $region13
    $region12: #{tpu_custom_call.1} parent=1 // pred_region
      %33 = vsyncadd [#allocation7], 0
      %s34 = sshll.u32 %s2, 4
      %s35 = int_to_ptr.hbm [resolvable:$true] %s34
      %s36 = sshll.u32 [#allocation6], 4
      %s37 = int_to_ptr.vmem [resolvable:$true] %s36
      %42 = dma.hbm_to_vmem [thread:$0]  %s35, 128, %s37, [#allocation7], 64, 64, 4
    $region13: #{tpu_custom_call.1} parent=1 // pred_fallthru
      _
    // Predicated region
    $region14: #{tpu_custom_call.1} parent=1 // pred_check
      _
    $region15: #{tpu_custom_call.1} parent=1 // pred_check_branch
      %44 = sbr.rel (0) target = $region17
    $region16: #{tpu_custom_call.1} parent=1 // pred_region
      _
    $region17: #{tpu_custom_call.1} parent=1 // pred_fallthru
      _
    // Predicated region
    $region18: #{tpu_custom_call.1} parent=1 // pred_check
      _
    $region19: #{tpu_custom_call.1} parent=1 // pred_check_branch
      %46 = sbr.rel (0) target = $region21
    $region20: #{tpu_custom_call.1} parent=1 // pred_region
      _
    $region21: #{tpu_custom_call.1} parent=1 // pred_fallthru
      _
    // Predicated region
    $region22: #{tpu_custom_call.1} parent=1 // pred_check
      _
    $region23: #{tpu_custom_call.1} parent=1 // pred_check_branch
      %48 = sbr.rel (0) target = $region25
    $region24: #{tpu_custom_call.1} parent=1 // pred_region
      _
    $region25: #{tpu_custom_call.1} parent=1 // pred_fallthru
      _
    // Predicated region
    $region26: #{tpu_custom_call.1} parent=1 // pred_check
      _
    $region27: #{tpu_custom_call.1} parent=1 // pred_check_branch
      %50 = sbr.rel (0) target = $region29
    $region28: #{tpu_custom_call.1} parent=1 // pred_region
      _
    $region29: #{tpu_custom_call.1} parent=1 // pred_fallthru
      _
    // Predicated region
    $region30: #{tpu_custom_call.1} parent=1 // pred_check
      _
    $region31: #{tpu_custom_call.1} parent=1 // pred_check_branch
      %52 = sbr.rel (0) target = $region33
    $region32: #{tpu_custom_call.1} parent=1 // pred_region
      _
    $region33: #{tpu_custom_call.1} parent=1 // pred_fallthru
      _
    // Predicated region
    $region34: #{tpu_custom_call.1} parent=1 // pred_check
      _
    $region35: #{tpu_custom_call.1} parent=1 // pred_check_branch
      %54 = sbr.rel (0) target = $region37
    $region36: #{tpu_custom_call.1} parent=1 // pred_region
      %56 = dma.done [#allocation4], 128
    $region37: #{tpu_custom_call.1} parent=1 // pred_fallthru
      _
    // Predicated region
    $region38: #{tpu_custom_call.1} parent=1 // pred_check
      _
    $region39: #{tpu_custom_call.1} parent=1 // pred_check_branch
      %58 = sbr.rel (0) target = $region41
    $region40: #{tpu_custom_call.1} parent=1 // pred_region
      %60 = dma.done [#allocation7], 128
    $region41: #{tpu_custom_call.1} parent=1 // pred_fallthru
      _
    %v62 = vld [vmem:[#allocation3] sm:$0xff]
    %v63 = vld [vmem:[%s1] sm:$0xff]
    %65 = vrot.lane.b32.xlu0 %v63, 12
    %v66 = vpop.permute.xlu0 %65
    %vm68 = vcmask 97280
    %v69 = vsel %vm68, %v62, %v66
    %v70 = vpack.c.bf16 %v69, %v69
    %v71 = vld [vmem:[#allocation6] sm:$0xf]
    %v72 = vld [vmem:[#allocation6 + $0x4] sm:$0xf]
    %v73 = vld [vmem:[%s3] sm:$0x1]
    %v75 = vperm.slane %v73, 0
    %v79 = vunpack.c.l.b16 %v71
    %v80 = vunpack.c.l.b16 %v72
    %v81 = vpack.c.b16 %v80, %v79
    %vm83 = vcmask 130048
    %v85 = vsel %vm83, %v70, 0
    %87 = vmatpush.bf16.msra.mxu0 0
    %88 = vmatpush.bf16.msra.mxu0 0
    %89 = vmatpush.bf16.msra.mxu0 0
    %90 = vmatpush.bf16.msra.mxu0 0
    %91 = vmatpush.bf16.msra.mxu0 0
    %92 = vmatpush.bf16.msra.mxu0 0
    %93 = vmatpush.bf16.msra.mxu0 0
    %94 = vmatpush.bf16.msra.mxu0 %v81
    %95 = vmatmul.bf16.gmra.mxu0 %v85
    %v96 = vpop.f32.mrf.mxu0
    %v97 = vadd.f32 %v75, %v96
    %v98 = vpop.f32.mrf.mxu0
    %99 = vdwg.mxu0
    %v100 = vmax.f32 %v97, 0.0
    %v101 = vpack.c.bf16 %v100, %v100
    %v102 = vld [vmem:[%s4] sm:$0xf]
    %v103 = vld [vmem:[%s4 + $0x4] sm:$0xf]
    %v104 = vld [vmem:[%s4 + $0x8] sm:$0xf]
    %v105 = vld [vmem:[%s4 + $0xc] sm:$0xf]
    %v106 = vld [vmem:[%s5] sm:$0x1]
    %v108 = vperm.slane %v106, 0
    %v114 = vunpack.c.l.b16 %v102
    %v115 = vunpack.c.l.b16 %v103
    %v116 = vunpack.c.l.b16 %v104
    %v117 = vunpack.c.l.b16 %v105
    %v118 = vpack.c.b16 %v115, %v114
    %v119 = vpack.c.b16 %v117, %v116
    %vm122 = vcmask 261120
    %v124 = vsel %vm122, %v101, 0
    %126 = vmatpush.bf16.msra.mxu0 0
    %127 = vmatpush.bf16.msra.mxu0 0
    %128 = vmatpush.bf16.msra.mxu0 0
    %129 = vmatpush.bf16.msra.mxu0 0
    %130 = vmatpush.bf16.msra.mxu0 0
    %131 = vmatpush.bf16.msra.mxu0 0
    %132 = vmatpush.bf16.msra.mxu0 %v119
    %133 = vmatpush.bf16.msra.mxu0 %v118
    %134 = vmatmul.bf16.gmra.mxu0 %v124
    %v135 = vpop.f32.mrf.mxu0
    %v136 = vadd.f32 %v108, %v135
    %v137 = vpop.f32.mrf.mxu0
    %138 = vdwg.mxu0
    %v139 = vmax.f32 %v136, 0.0
    %v140 = vld [vmem:[%s6] sm:$0x1]
    %v141 = vpack.c.bf16 %v139, %v139
    %s142 = sld [smem:[#allocation2]]
    %v143 = vstv %s142
    %v145 = vsel %vm122, %v140, 0
    %v148 = vsel %vm122, %v141, 0
    %150 = vmatpush.bf16.xpose.msra.mxu0 0
    %151 = vmatpush.bf16.xpose.msra.mxu0 0
    %152 = vmatpush.bf16.xpose.msra.mxu0 0
    %153 = vmatpush.bf16.xpose.msra.mxu0 0
    %154 = vmatpush.bf16.xpose.msra.mxu0 0
    %155 = vmatpush.bf16.xpose.msra.mxu0 0
    %156 = vmatpush.bf16.xpose.msra.mxu0 0
    %157 = vmatpush.bf16.xpose.msra.mxu0 %v148
    %158 = vmatmul.bf16.gmra.mxu0 %v145
    %v159 = vpop.f32.mrf.mxu0
    %v160 = vadd.f32 %v143, %v159
    %v161 = vpop.f32.mrf.mxu0
    %162 = vdwg.mxu0
    %vm163 = vcmask 57344
    %164 = vst.msk [vmem:[#allocation8] sm:$0x1] %vm163, %v160
    // Predicated region
    $region42: #{tpu_custom_call.1} parent=1 // pred_check
      _
    $region43: #{tpu_custom_call.1} parent=1 // pred_check_branch
      %166 = sbr.rel (0) target = $region45
    $region44: #{tpu_custom_call.1} parent=1 // pred_region
      %168 = vsyncadd [#allocation5], 0
      %s170 = sshll.u32 [#allocation8], 4
      %s171 = int_to_ptr.vmem [resolvable:$true] %s170
      %s172 = sshll.u32 %s8, 4
      %s173 = int_to_ptr.hbm [resolvable:$true] %s172
      %175 = dma.vmem_to_hbm [thread:$0]  %s171, 16, %s173, [#allocation5]
    $region45: #{tpu_custom_call.1} parent=1 // pred_fallthru
      _
    // Predicated region
    $region46: #{tpu_custom_call.1} parent=1 // pred_check
      _
    $region47: #{tpu_custom_call.1} parent=1 // pred_check_branch
      %177 = sbr.rel (0) target = $region49
    $region48: #{tpu_custom_call.1} parent=1 // pred_region
      %179 = dma.done [#allocation5], 16
    $region49: #{tpu_custom_call.1} parent=1 // pred_fallthru
      _
    %180 = vsyncpa [#allocation4], 1
    %181 = vsyncpa [#allocation7], 1
    %182 = vsyncpa [#allocation5], 1

// kernel: tpu_custom_call.1
$region0: #{tpu_custom_call.1}
  #allocation0 [shape = 'u32[]', space=smem, size = 0x4, offset = 0x4, fixed_abs, tag = 'smem constant byte address 0x4 - core index']
  #allocation1 [shape = 'u32[72,128]{1,0:T(1,128)}', space=vmem, size = 0x9000, scoped, tag = 'internal scratch']
  #allocation2 [shape = 'f32[1]{0:T(128)S(6)}', space=smem, size = 0x200, scoped, tag = 'scoped memory for tpu_custom_call.1']
  %s0 = inlined_call_operand.hbm [shape: f32[8,12], index: 0, kind: input, shape index: {}]
  %s1 = inlined_call_operand.vmem [shape: f32[8,4], index: 1, kind: input, shape index: {}]
  %s2 = inlined_call_operand.hbm [shape: bf16[12,32], index: 2, kind: input, shape index: {}]
  %s3 = inlined_call_operand.vmem [shape: bf16[4,32], index: 3, kind: input, shape index: {}]
  %s4 = inlined_call_operand.hbm [shape: f32[1,32], index: 4, kind: input, shape index: {}]
  %s5 = inlined_call_operand.vmem [shape: bf16[32,32], index: 5, kind: input, shape index: {}]
  %s6 = inlined_call_operand.vmem [shape: f32[1,32], index: 6, kind: input, shape index: {}]
  %s7 = inlined_call_operand.vmem [shape: bf16[1,32], index: 7, kind: input, shape index: {}]
  %s8 = inlined_call_operand.<no memory space> [shape: f32[1], index: 8, kind: input, shape index: {}]
  %s9 = inlined_call_operand.hbm [shape: f32[1,8], index: 9, kind: output, shape index: {}]
  %s10 = sld [smem:[#allocation0]]
  $region58: #{tpu_custom_call.1} parent=0
    _
  %s12 = ssub.s32 1, %s10
  %s13 = scalar_select 0, %s12, %s10
  %14 = sst [smem:[#allocation2]] %s8
  $region1: #{tpu_custom_call.1} parent=0
    #allocation3 [shape = 'u8[4096]{0}', space=vmem, size = 0x1000, scoped, tag = 'input window, operand 0, single buffered']
    #allocation4 [shape = 's32[1]{0}', space=sflag, size = 0x4, scoped, tag = 'scoped memory for tpu_custom_call.1']
    #allocation5 [shape = 's32[1]{0}', space=sflag, size = 0x4, scoped, tag = 'scoped memory for tpu_custom_call.1']
    #allocation6 [shape = 'u8[4096]{0}', space=vmem, size = 0x1000, scoped, tag = 'input window, operand 2, single buffered']
    #allocation7 [shape = 's32[1]{0}', space=sflag, size = 0x4, scoped, tag = 'scoped memory for tpu_custom_call.1']
    #allocation8 [shape = 'u8[512]{0}', space=vmem, size = 0x400, scoped, tag = 'input window, operand 4, single buffered']
    #allocation9 [shape = 'u8[512]{0}', space=vmem, size = 0x400, scoped, tag = 'output window, operand 0, single buffered']
    %15 = vsyncpa [#allocation4], 0
    %16 = vsyncpa [#allocation7], 0
    %17 = vsyncpa [#allocation5], 0
    // Predicated region
    $region2: #{tpu_custom_call.1} parent=1 // pred_check
      _
    $region3: #{tpu_custom_call.1} parent=1 // pred_check_branch
      %19 = sbr.rel (0) target = $region5
    $region4: #{tpu_custom_call.1} parent=1 // pred_region
      %21 = vsyncadd [#allocation4], 0
      %s23 = sshll.u32 %s0, 4
      %s24 = int_to_ptr.hbm [resolvable:$true] %s23
      %s25 = sshll.u32 [#allocation3], 4
      %s26 = int_to_ptr.vmem [resolvable:$true] %s25
      %28 = dma.hbm_to_vmem [thread:$0]  %s24, 128, %s26, [#allocation4]
    $region5: #{tpu_custom_call.1} parent=1 // pred_fallthru
      _
    // Predicated region
    $region6: #{tpu_custom_call.1} parent=1 // pred_check
      _
    $region7: #{tpu_custom_call.1} parent=1 // pred_check_branch
      %30 = sbr.rel (0) target = $region9
    $region8: #{tpu_custom_call.1} parent=1 // pred_region
      _
    $region9: #{tpu_custom_call.1} parent=1 // pred_fallthru
      _
    // Predicated region
    $region10: #{tpu_custom_call.1} parent=1 // pred_check
      _
    $region11: #{tpu_custom_call.1} parent=1 // pred_check_branch
      %32 = sbr.rel (0) target = $region13
    $region12: #{tpu_custom_call.1} parent=1 // pred_region
      %34 = vsyncadd [#allocation7], 0
      %s35 = sshll.u32 %s2, 4
      %s36 = int_to_ptr.hbm [resolvable:$true] %s35
      %s37 = sshll.u32 [#allocation6], 4
      %s38 = int_to_ptr.vmem [resolvable:$true] %s37
      %43 = dma.hbm_to_vmem [thread:$0]  %s36, 128, %s38, [#allocation7], 64, 64, 4
    $region13: #{tpu_custom_call.1} parent=1 // pred_fallthru
      _
    // Predicated region
    $region14: #{tpu_custom_call.1} parent=1 // pred_check
      _
    $region15: #{tpu_custom_call.1} parent=1 // pred_check_branch
      %45 = sbr.rel (0) target = $region17
    $region16: #{tpu_custom_call.1} parent=1 // pred_region
      _
    $region17: #{tpu_custom_call.1} parent=1 // pred_fallthru
      _
    // Predicated region
    $region18: #{tpu_custom_call.1} parent=1 // pred_check
      _
    $region19: #{tpu_custom_call.1} parent=1 // pred_check_branch
      %47 = sbr.rel (0) target = $region21
    $region20: #{tpu_custom_call.1} parent=1 // pred_region
      %49 = vsyncadd [#allocation7], 0
      %s51 = sshll.u32 %s4, 4
      %s52 = int_to_ptr.hbm [resolvable:$true] %s51
      %s53 = sshll.u32 [#allocation8], 4
      %s54 = int_to_ptr.vmem [resolvable:$true] %s53
      %56 = dma.hbm_to_vmem [thread:$0]  %s52, 16, %s54, [#allocation7]
    $region21: #{tpu_custom_call.1} parent=1 // pred_fallthru
      _
    // Predicated region
    $region22: #{tpu_custom_call.1} parent=1 // pred_check
      _
    $region23: #{tpu_custom_call.1} parent=1 // pred_check_branch
      %58 = sbr.rel (0) target = $region25
    $region24: #{tpu_custom_call.1} parent=1 // pred_region
      _
    $region25: #{tpu_custom_call.1} parent=1 // pred_fallthru
      _
    // Predicated region
    $region26: #{tpu_custom_call.1} parent=1 // pred_check
      _
    $region27: #{tpu_custom_call.1} parent=1 // pred_check_branch
      %60 = sbr.rel (0) target = $region29
    $region28: #{tpu_custom_call.1} parent=1 // pred_region
      _
    $region29: #{tpu_custom_call.1} parent=1 // pred_fallthru
      _
    // Predicated region
    $region30: #{tpu_custom_call.1} parent=1 // pred_check
      _
    $region31: #{tpu_custom_call.1} parent=1 // pred_check_branch
      %62 = sbr.rel (0) target = $region33
    $region32: #{tpu_custom_call.1} parent=1 // pred_region
      _
    $region33: #{tpu_custom_call.1} parent=1 // pred_fallthru
      _
    // Predicated region
    $region34: #{tpu_custom_call.1} parent=1 // pred_check
      _
    $region35: #{tpu_custom_call.1} parent=1 // pred_check_branch
      %64 = sbr.rel (0) target = $region37
    $region36: #{tpu_custom_call.1} parent=1 // pred_region
      _
    $region37: #{tpu_custom_call.1} parent=1 // pred_fallthru
      _
    // Predicated region
    $region38: #{tpu_custom_call.1} parent=1 // pred_check
      _
    $region39: #{tpu_custom_call.1} parent=1 // pred_check_branch
      %66 = sbr.rel (0) target = $region41
    $region40: #{tpu_custom_call.1} parent=1 // pred_region
      %68 = dma.done [#allocation4], 128
    $region41: #{tpu_custom_call.1} parent=1 // pred_fallthru
      _
    // Predicated region
    $region42: #{tpu_custom_call.1} parent=1 // pred_check
      _
    $region43: #{tpu_custom_call.1} parent=1 // pred_check_branch
      %70 = sbr.rel (0) target = $region45
    $region44: #{tpu_custom_call.1} parent=1 // pred_region
      %72 = dma.done [#allocation7], 128
    $region45: #{tpu_custom_call.1} parent=1 // pred_fallthru
      _
    // Predicated region
    $region46: #{tpu_custom_call.1} parent=1 // pred_check
      _
    $region47: #{tpu_custom_call.1} parent=1 // pred_check_branch
      %74 = sbr.rel (0) target = $region49
    $region48: #{tpu_custom_call.1} parent=1 // pred_region
      %76 = dma.done [#allocation7], 16
    $region49: #{tpu_custom_call.1} parent=1 // pred_fallthru
      _
    %v78 = vld [vmem:[#allocation3] sm:$0xff]
    %v79 = vpack.c.bf16 %v78, %v78
    %v80 = vld [vmem:[#allocation6] sm:$0xf]
    %v81 = vld [vmem:[#allocation6 + $0x4] sm:$0x3]
    %v82 = vld [vmem:[%s1] sm:$0xff]
    %v83 = vpack.c.bf16 %v82, %v82
    %v84 = vld [vmem:[%s3] sm:$0x3]
    %vm85 = vcmask 31744
    %v87 = vsel %vm85, %v83, 0
    %vm89 = vcmask 1041408
    %v91 = vsel %vm89, %v84, 0
    %93 = vmatpush.bf16.msra.mxu0 0
    %94 = vmatpush.bf16.msra.mxu0 0
    %95 = vmatpush.bf16.msra.mxu0 0
    %96 = vmatpush.bf16.msra.mxu0 0
    %97 = vmatpush.bf16.msra.mxu0 0
    %98 = vmatpush.bf16.msra.mxu0 0
    %99 = vmatpush.bf16.msra.mxu0 0
    %100 = vmatpush.bf16.msra.mxu0 %v91
    %101 = vmatmul.bf16.gmra.mxu0 %v87
    %v102 = vpop.f32.mrf.mxu0
    %v103 = vadd.f32 0.0, %v102
    %v104 = vpop.f32.mrf.mxu0
    %105 = vdwg.mxu0
    %v108 = vunpack.c.l.b16 %v80
    %v109 = vunpack.c.l.b16 %v81
    %v110 = vpack.c.b16 %v109, %v108
    %vm111 = vcmask 97280
    %v113 = vsel %vm111, %v79, 0
    %vm115 = vcmask 1045504
    %v117 = vsel %vm115, %v110, 0
    %119 = vmatpush.bf16.msra.mxu0 0
    %120 = vmatpush.bf16.msra.mxu0 0
    %121 = vmatpush.bf16.msra.mxu0 0
    %122 = vmatpush.bf16.msra.mxu0 0
    %123 = vmatpush.bf16.msra.mxu0 0
    %124 = vmatpush.bf16.msra.mxu0 0
    %125 = vmatpush.bf16.msra.mxu0 0
    %126 = vmatpush.bf16.msra.mxu0 %v117
    %127 = vmatmul.bf16.gmra.mxu0 %v113
    %v128 = vpop.f32.mrf.mxu0
    %v129 = vadd.f32 %v103, %v128
    %v130 = vpop.f32.mrf.mxu0
    %131 = vdwg.mxu0
    %v132 = vld [vmem:[#allocation8] sm:$0x1]
    %v134 = vperm.slane %v132, 0
    %v136 = vadd.f32 %v129, %v134
    %v137 = vmax.f32 %v136, 0.0
    %v138 = vpack.c.bf16 %v137, %v137
    %v139 = vld [vmem:[%s5] sm:$0xf]
    %v140 = vld [vmem:[%s5 + $0x4] sm:$0xf]
    %v141 = vld [vmem:[%s5 + $0x8] sm:$0xf]
    %v142 = vld [vmem:[%s5 + $0xc] sm:$0xf]
    %v143 = vld [vmem:[%s6] sm:$0x1]
    %v145 = vperm.slane %v143, 0
    %v151 = vunpack.c.l.b16 %v139
    %v152 = vunpack.c.l.b16 %v140
    %v153 = vunpack.c.l.b16 %v141
    %v154 = vunpack.c.l.b16 %v142
    %v155 = vpack.c.b16 %v152, %v151
    %v156 = vpack.c.b16 %v154, %v153
    %vm159 = vcmask 261120
    %v161 = vsel %vm159, %v138, 0
    %163 = vmatpush.bf16.msra.mxu0 0
    %164 = vmatpush.bf16.msra.mxu0 0
    %165 = vmatpush.bf16.msra.mxu0 0
    %166 = vmatpush.bf16.msra.mxu0 0
    %167 = vmatpush.bf16.msra.mxu0 0
    %168 = vmatpush.bf16.msra.mxu0 0
    %169 = vmatpush.bf16.msra.mxu0 %v156
    %170 = vmatpush.bf16.msra.mxu0 %v155
    %171 = vmatmul.bf16.gmra.mxu0 %v161
    %v172 = vpop.f32.mrf.mxu0
    %v173 = vadd.f32 %v145, %v172
    %v174 = vpop.f32.mrf.mxu0
    %175 = vdwg.mxu0
    %v176 = vmax.f32 %v173, 0.0
    %v177 = vld [vmem:[%s7] sm:$0x1]
    %v178 = vpack.c.bf16 %v176, %v176
    %s179 = sld [smem:[#allocation2]]
    %v180 = vstv %s179
    %v182 = vsel %vm159, %v177, 0
    %v185 = vsel %vm159, %v178, 0
    %187 = vmatpush.bf16.xpose.msra.mxu0 0
    %188 = vmatpush.bf16.xpose.msra.mxu0 0
    %189 = vmatpush.bf16.xpose.msra.mxu0 0
    %190 = vmatpush.bf16.xpose.msra.mxu0 0
    %191 = vmatpush.bf16.xpose.msra.mxu0 0
    %192 = vmatpush.bf16.xpose.msra.mxu0 0
    %193 = vmatpush.bf16.xpose.msra.mxu0 0
    %194 = vmatpush.bf16.xpose.msra.mxu0 %v185
    %195 = vmatmul.bf16.gmra.mxu0 %v182
    %v196 = vpop.f32.mrf.mxu0
    %v197 = vadd.f32 %v180, %v196
    %v198 = vpop.f32.mrf.mxu0
    %199 = vdwg.mxu0
    %vm200 = vcmask 57344
    %201 = vst.msk [vmem:[#allocation9] sm:$0x1] %vm200, %v197
    // Predicated region
    $region50: #{tpu_custom_call.1} parent=1 // pred_check
      _
    $region51: #{tpu_custom_call.1} parent=1 // pred_check_branch
      %203 = sbr.rel (0) target = $region53
    $region52: #{tpu_custom_call.1} parent=1 // pred_region
      %205 = vsyncadd [#allocation5], 0
      %s207 = sshll.u32 [#allocation9], 4
      %s208 = int_to_ptr.vmem [resolvable:$true] %s207
      %s209 = sshll.u32 %s9, 4
      %s210 = int_to_ptr.hbm [resolvable:$true] %s209
      %212 = dma.vmem_to_hbm [thread:$0]  %s208, 16, %s210, [#allocation5]
    $region53: #{tpu_custom_call.1} parent=1 // pred_fallthru
      _
    // Predicated region
    $region54: #{tpu_custom_call.1} parent=1 // pred_check
      _
    $region55: #{tpu_custom_call.1} parent=1 // pred_check_branch
      %214 = sbr.rel (0) target = $region57
    $region56: #{tpu_custom_call.1} parent=1 // pred_region
      %216 = dma.done [#allocation5], 16
    $region57: #{tpu_custom_call.1} parent=1 // pred_fallthru
      _
    %217 = vsyncpa [#allocation4], 1
    %218 = vsyncpa [#allocation7], 1
    %219 = vsyncpa [#allocation5], 1

// kernel: tpu_custom_call.1
$region0: #{tpu_custom_call.1}
  #allocation0 [shape = 'u32[]', space=smem, size = 0x4, offset = 0x4, fixed_abs, tag = 'smem constant byte address 0x4 - core index']
  #allocation1 [shape = 'u32[72,128]{1,0:T(1,128)}', space=vmem, size = 0x9000, scoped, tag = 'internal scratch']
  #allocation2 [shape = 'f32[1]{0:T(128)S(6)}', space=smem, size = 0x200, scoped, tag = 'scoped memory for tpu_custom_call.1']
  %s0 = inlined_call_operand.hbm [shape: f32[8,12], index: 0, kind: input, shape index: {}]
  %s1 = inlined_call_operand.vmem [shape: f32[8,4], index: 1, kind: input, shape index: {}]
  %s2 = inlined_call_operand.hbm [shape: bf16[12,32], index: 2, kind: input, shape index: {}]
  %s3 = inlined_call_operand.vmem [shape: bf16[4,32], index: 3, kind: input, shape index: {}]
  %s4 = inlined_call_operand.hbm [shape: f32[1,32], index: 4, kind: input, shape index: {}]
  %s5 = inlined_call_operand.vmem [shape: bf16[32,32], index: 5, kind: input, shape index: {}]
  %s6 = inlined_call_operand.vmem [shape: f32[1,32], index: 6, kind: input, shape index: {}]
  %s7 = inlined_call_operand.vmem [shape: bf16[1,32], index: 7, kind: input, shape index: {}]
  %s8 = inlined_call_operand.<no memory space> [shape: f32[1], index: 8, kind: input, shape index: {}]
  %s9 = inlined_call_operand.hbm [shape: f32[1,8], index: 9, kind: output, shape index: {}]
  %s10 = sld [smem:[#allocation0]]
  $region58: #{tpu_custom_call.1} parent=0
    _
  %s12 = ssub.s32 1, %s10
  %s13 = scalar_select 0, %s12, %s10
  %14 = sst [smem:[#allocation2]] %s8
  $region1: #{tpu_custom_call.1} parent=0
    #allocation3 [shape = 'u8[4096]{0}', space=vmem, size = 0x1000, scoped, tag = 'input window, operand 0, single buffered']
    #allocation4 [shape = 's32[1]{0}', space=sflag, size = 0x4, scoped, tag = 'scoped memory for tpu_custom_call.1']
    #allocation5 [shape = 's32[1]{0}', space=sflag, size = 0x4, scoped, tag = 'scoped memory for tpu_custom_call.1']
    #allocation6 [shape = 'u8[4096]{0}', space=vmem, size = 0x1000, scoped, tag = 'input window, operand 2, single buffered']
    #allocation7 [shape = 's32[1]{0}', space=sflag, size = 0x4, scoped, tag = 'scoped memory for tpu_custom_call.1']
    #allocation8 [shape = 'u8[512]{0}', space=vmem, size = 0x400, scoped, tag = 'input window, operand 4, single buffered']
    #allocation9 [shape = 'u8[512]{0}', space=vmem, size = 0x400, scoped, tag = 'output window, operand 0, single buffered']
    %15 = vsyncpa [#allocation4], 0
    %16 = vsyncpa [#allocation7], 0
    %17 = vsyncpa [#allocation5], 0
    // Predicated region
    $region2: #{tpu_custom_call.1} parent=1 // pred_check
      _
    $region3: #{tpu_custom_call.1} parent=1 // pred_check_branch
      %19 = sbr.rel (0) target = $region5
    $region4: #{tpu_custom_call.1} parent=1 // pred_region
      %21 = vsyncadd [#allocation4], 0
      %s23 = sshll.u32 %s0, 4
      %s24 = int_to_ptr.hbm [resolvable:$true] %s23
      %s25 = sshll.u32 [#allocation3], 4
      %s26 = int_to_ptr.vmem [resolvable:$true] %s25
      %28 = dma.hbm_to_vmem [thread:$0]  %s24, 128, %s26, [#allocation4]
    $region5: #{tpu_custom_call.1} parent=1 // pred_fallthru
      _
    // Predicated region
    $region6: #{tpu_custom_call.1} parent=1 // pred_check
      _
    $region7: #{tpu_custom_call.1} parent=1 // pred_check_branch
      %30 = sbr.rel (0) target = $region9
    $region8: #{tpu_custom_call.1} parent=1 // pred_region
      _
    $region9: #{tpu_custom_call.1} parent=1 // pred_fallthru
      _
    // Predicated region
    $region10: #{tpu_custom_call.1} parent=1 // pred_check
      _
    $region11: #{tpu_custom_call.1} parent=1 // pred_check_branch
      %32 = sbr.rel (0) target = $region13
    $region12: #{tpu_custom_call.1} parent=1 // pred_region
      %34 = vsyncadd [#allocation7], 0
      %s35 = sshll.u32 %s2, 4
      %s36 = int_to_ptr.hbm [resolvable:$true] %s35
      %s37 = sshll.u32 [#allocation6], 4
      %s38 = int_to_ptr.vmem [resolvable:$true] %s37
      %43 = dma.hbm_to_vmem [thread:$0]  %s36, 128, %s38, [#allocation7], 64, 64, 4
    $region13: #{tpu_custom_call.1} parent=1 // pred_fallthru
      _
    // Predicated region
    $region14: #{tpu_custom_call.1} parent=1 // pred_check
      _
    $region15: #{tpu_custom_call.1} parent=1 // pred_check_branch
      %45 = sbr.rel (0) target = $region17
    $region16: #{tpu_custom_call.1} parent=1 // pred_region
      _
    $region17: #{tpu_custom_call.1} parent=1 // pred_fallthru
      _
    // Predicated region
    $region18: #{tpu_custom_call.1} parent=1 // pred_check
      _
    $region19: #{tpu_custom_call.1} parent=1 // pred_check_branch
      %47 = sbr.rel (0) target = $region21
    $region20: #{tpu_custom_call.1} parent=1 // pred_region
      %49 = vsyncadd [#allocation7], 0
      %s51 = sshll.u32 %s4, 4
      %s52 = int_to_ptr.hbm [resolvable:$true] %s51
      %s53 = sshll.u32 [#allocation8], 4
      %s54 = int_to_ptr.vmem [resolvable:$true] %s53
      %56 = dma.hbm_to_vmem [thread:$0]  %s52, 16, %s54, [#allocation7]
    $region21: #{tpu_custom_call.1} parent=1 // pred_fallthru
      _
    // Predicated region
    $region22: #{tpu_custom_call.1} parent=1 // pred_check
      _
    $region23: #{tpu_custom_call.1} parent=1 // pred_check_branch
      %58 = sbr.rel (0) target = $region25
    $region24: #{tpu_custom_call.1} parent=1 // pred_region
      _
    $region25: #{tpu_custom_call.1} parent=1 // pred_fallthru
      _
    // Predicated region
    $region26: #{tpu_custom_call.1} parent=1 // pred_check
      _
    $region27: #{tpu_custom_call.1} parent=1 // pred_check_branch
      %60 = sbr.rel (0) target = $region29
    $region28: #{tpu_custom_call.1} parent=1 // pred_region
      _
    $region29: #{tpu_custom_call.1} parent=1 // pred_fallthru
      _
    // Predicated region
    $region30: #{tpu_custom_call.1} parent=1 // pred_check
      _
    $region31: #{tpu_custom_call.1} parent=1 // pred_check_branch
      %62 = sbr.rel (0) target = $region33
    $region32: #{tpu_custom_call.1} parent=1 // pred_region
      _
    $region33: #{tpu_custom_call.1} parent=1 // pred_fallthru
      _
    // Predicated region
    $region34: #{tpu_custom_call.1} parent=1 // pred_check
      _
    $region35: #{tpu_custom_call.1} parent=1 // pred_check_branch
      %64 = sbr.rel (0) target = $region37
    $region36: #{tpu_custom_call.1} parent=1 // pred_region
      _
    $region37: #{tpu_custom_call.1} parent=1 // pred_fallthru
      _
    // Predicated region
    $region38: #{tpu_custom_call.1} parent=1 // pred_check
      _
    $region39: #{tpu_custom_call.1} parent=1 // pred_check_branch
      %66 = sbr.rel (0) target = $region41
    $region40: #{tpu_custom_call.1} parent=1 // pred_region
      %68 = dma.done [#allocation4], 128
    $region41: #{tpu_custom_call.1} parent=1 // pred_fallthru
      _
    // Predicated region
    $region42: #{tpu_custom_call.1} parent=1 // pred_check
      _
    $region43: #{tpu_custom_call.1} parent=1 // pred_check_branch
      %70 = sbr.rel (0) target = $region45
    $region44: #{tpu_custom_call.1} parent=1 // pred_region
      %72 = dma.done [#allocation7], 128
    $region45: #{tpu_custom_call.1} parent=1 // pred_fallthru
      _
    // Predicated region
    $region46: #{tpu_custom_call.1} parent=1 // pred_check
      _
    $region47: #{tpu_custom_call.1} parent=1 // pred_check_branch
      %74 = sbr.rel (0) target = $region49
    $region48: #{tpu_custom_call.1} parent=1 // pred_region
      %76 = dma.done [#allocation7], 16
    $region49: #{tpu_custom_call.1} parent=1 // pred_fallthru
      _
    %v78 = vld [vmem:[#allocation3] sm:$0xff]
    %v79 = vpack.c.bf16 %v78, %v78
    %v80 = vld [vmem:[#allocation6] sm:$0xf]
    %v81 = vld [vmem:[#allocation6 + $0x4] sm:$0x3]
    %v82 = vld [vmem:[%s1] sm:$0xff]
    %v83 = vpack.c.bf16 %v82, %v82
    %v84 = vld [vmem:[%s3] sm:$0x3]
    %vm85 = vcmask 31744
    %v87 = vsel %vm85, %v83, 0
    %vm89 = vcmask 1041408
    %v91 = vsel %vm89, %v84, 0
    %93 = vmatpush.bf16.msra.mxu0 0
    %94 = vmatpush.bf16.msra.mxu0 0
    %95 = vmatpush.bf16.msra.mxu0 0
    %96 = vmatpush.bf16.msra.mxu0 0
    %97 = vmatpush.bf16.msra.mxu0 0
    %98 = vmatpush.bf16.msra.mxu0 0
    %99 = vmatpush.bf16.msra.mxu0 0
    %100 = vmatpush.bf16.msra.mxu0 %v91
    %101 = vmatmul.bf16.gmra.mxu0 %v87
    %v102 = vpop.f32.mrf.mxu0
    %v103 = vadd.f32 0.0, %v102
    %v104 = vpop.f32.mrf.mxu0
    %105 = vdwg.mxu0
    %v108 = vunpack.c.l.b16 %v80
    %v109 = vunpack.c.l.b16 %v81
    %v110 = vpack.c.b16 %v109, %v108
    %vm111 = vcmask 97280
    %v113 = vsel %vm111, %v79, 0
    %vm115 = vcmask 1045504
    %v117 = vsel %vm115, %v110, 0
    %119 = vmatpush.bf16.msra.mxu0 0
    %120 = vmatpush.bf16.msra.mxu0 0
    %121 = vmatpush.bf16.msra.mxu0 0
    %122 = vmatpush.bf16.msra.mxu0 0
    %123 = vmatpush.bf16.msra.mxu0 0
    %124 = vmatpush.bf16.msra.mxu0 0
    %125 = vmatpush.bf16.msra.mxu0 0
    %126 = vmatpush.bf16.msra.mxu0 %v117
    %127 = vmatmul.bf16.gmra.mxu0 %v113
    %v128 = vpop.f32.mrf.mxu0
    %v129 = vadd.f32 %v103, %v128
    %v130 = vpop.f32.mrf.mxu0
    %131 = vdwg.mxu0
    %v132 = vld [vmem:[#allocation8] sm:$0x1]
    %v134 = vperm.slane %v132, 0
    %v136 = vadd.f32 %v129, %v134
    %v137 = vmax.f32 %v136, 0.0
    %v138 = vpack.c.bf16 %v137, %v137
    %v139 = vld [vmem:[%s5] sm:$0xf]
    %v140 = vld [vmem:[%s5 + $0x4] sm:$0xf]
    %v141 = vld [vmem:[%s5 + $0x8] sm:$0xf]
    %v142 = vld [vmem:[%s5 + $0xc] sm:$0xf]
    %v143 = vld [vmem:[%s6] sm:$0x1]
    %v145 = vperm.slane %v143, 0
    %v151 = vunpack.c.l.b16 %v139
    %v152 = vunpack.c.l.b16 %v140
    %v153 = vunpack.c.l.b16 %v141
    %v154 = vunpack.c.l.b16 %v142
    %v155 = vpack.c.b16 %v152, %v151
    %v156 = vpack.c.b16 %v154, %v153
    %vm159 = vcmask 261120
    %v161 = vsel %vm159, %v138, 0
    %163 = vmatpush.bf16.msra.mxu0 0
    %164 = vmatpush.bf16.msra.mxu0 0
    %165 = vmatpush.bf16.msra.mxu0 0
    %166 = vmatpush.bf16.msra.mxu0 0
    %167 = vmatpush.bf16.msra.mxu0 0
    %168 = vmatpush.bf16.msra.mxu0 0
    %169 = vmatpush.bf16.msra.mxu0 %v156
    %170 = vmatpush.bf16.msra.mxu0 %v155
    %171 = vmatmul.bf16.gmra.mxu0 %v161
    %v172 = vpop.f32.mrf.mxu0
    %v173 = vadd.f32 %v145, %v172
    %v174 = vpop.f32.mrf.mxu0
    %175 = vdwg.mxu0
    %v176 = vmax.f32 %v173, 0.0
    %v177 = vld [vmem:[%s7] sm:$0x1]
    %v178 = vpack.c.bf16 %v176, %v176
    %s179 = sld [smem:[#allocation2]]
    %v180 = vstv %s179
    %v182 = vsel %vm159, %v177, 0
    %v185 = vsel %vm159, %v178, 0
    %187 = vmatpush.bf16.xpose.msra.mxu0 0
    %188 = vmatpush.bf16.xpose.msra.mxu0 0
    %189 = vmatpush.bf16.xpose.msra.mxu0 0
    %190 = vmatpush.bf16.xpose.msra.mxu0 0
    %191 = vmatpush.bf16.xpose.msra.mxu0 0
    %192 = vmatpush.bf16.xpose.msra.mxu0 0
    %193 = vmatpush.bf16.xpose.msra.mxu0 0
    %194 = vmatpush.bf16.xpose.msra.mxu0 %v185
    %195 = vmatmul.bf16.gmra.mxu0 %v182
    %v196 = vpop.f32.mrf.mxu0
    %v197 = vadd.f32 %v180, %v196
    %v198 = vpop.f32.mrf.mxu0
    %199 = vdwg.mxu0
    %vm200 = vcmask 57344
    %201 = vst.msk [vmem:[#allocation9] sm:$0x1] %vm200, %v197
    // Predicated region
    $region50: #{tpu_custom_call.1} parent=1 // pred_check
      _
    $region51: #{tpu_custom_call.1} parent=1 // pred_check_branch
      %203 = sbr.rel (0) target = $region53
    $region52: #{tpu_custom_call.1} parent=1 // pred_region
      %205 = vsyncadd [#allocation5], 0
      %s207 = sshll.u32 [#allocation9], 4
      %s208 = int_to_ptr.vmem [resolvable:$true] %s207
      %s209 = sshll.u32 %s9, 4
      %s210 = int_to_ptr.hbm [resolvable:$true] %s209
      %212 = dma.vmem_to_hbm [thread:$0]  %s208, 16, %s210, [#allocation5]
    $region53: #{tpu_custom_call.1} parent=1 // pred_fallthru
      _
    // Predicated region
    $region54: #{tpu_custom_call.1} parent=1 // pred_check
      _
    $region55: #{tpu_custom_call.1} parent=1 // pred_check_branch
      %214 = sbr.rel (0) target = $region57
    $region56: #{tpu_custom_call.1} parent=1 // pred_region
      %216 = dma.done [#allocation5], 16
    $region57: #{tpu_custom_call.1} parent=1 // pred_fallthru
      _
    %217 = vsyncpa [#allocation4], 1
    %218 = vsyncpa [#allocation7], 1
    %219 = vsyncpa [#allocation5], 1

</llo_original>
